<compile_context>
chip_gen: v5e
topology: v5e:2x2
jax: 0.10.0
libtpu: 0.0.40
codegen_flags: <defaults>
</compile_context>

<pallas_src>
import jax
import jax.numpy as jnp
import numpy as np
from jax.experimental import pallas as pl
from jax.experimental.pallas import tpu as pltpu


# ----------------------------------------------------------------------------
# Deterministic "random" choices (all inside the ranges the PyTorch module
# samples from, effect_strength = 1.0).  All five effects enabled.
# ----------------------------------------------------------------------------
EFFECT_STRENGTH = 1.0

STEAM_OPACITY = 0.2 * EFFECT_STRENGTH          # uniform(0.1, 0.3)
STEAM_NOISE_SCALE = 0.5                        # uniform(0.3, 0.7)
STEAM_SIGMA = 5.0                              # uniform(5, 20)
# TODO(synk): the reference's `random.randint(0, h//3, h//2)` for swirl_y is a
# 3-arg call that would raise at runtime; valid deterministic swirls are used.
# TODO(synk): the optional torchvision motion_blur branch (p=0.5) is skipped
# deterministically (no clean Pallas equivalent for its PIL-style random op).

WARMTH = 0.1 * EFFECT_STRENGTH                 # uniform(0.05, 0.15)
# off-center warmth branch (p=0.3) deterministically not taken

SHADOW_OPACITY = 0.25 * EFFECT_STRENGTH        # uniform(0.15, 0.4)
SHADOW_RADIUS_SCALE = 1.0                      # uniform(0.7, 1.3) * max(h, w)
SHADOW_SIGMA = 10.0                            # uniform(10, 30); corner 'tl'

LIGHT_INTENSITY = 0.15 * EFFECT_STRENGTH       # uniform(0.1, 0.25)
LIGHT_X, LIGHT_Y = 0.2, -0.1                   # uniform(-0.5, 0.5)
LIGHT_RADIUS = 0.6                             # uniform(0.4, 0.8)

BLOOM_STRENGTH = 0.15 * EFFECT_STRENGTH        # uniform(0.1, 0.2)
BLOOM_SIGMA = 6.0                              # uniform(5, 10)

STEAM_COLORS = (1.0, 1.0, 1.05)                # steam_color
WARMTH_COEFS = (1.0, 0.3, -0.2)                # per-channel warmth factor sign
LIGHT_COLORS = (1.05, 1.03, 1.0)               # light_color
GLOW_COLORS = (1.05, 1.03, 0.95)               # glow_color


def _round_up(x: int, mult: int) -> int:
    return (x + mult - 1) // mult * mult


def _module_ksize(sigma: float, mult: int) -> int:
    # kernel_size = int(sigma*mult)//2*2+1 ; then _apply_gaussian_blur:
    # kernel_size = max(3, int(kernel_size)//2*2+1)
    ks = int(sigma * mult) // 2 * 2 + 1
    return max(3, int(ks) // 2 * 2 + 1)


def _gaussian_blur_matrix(n: int, ksize: int, sigma: float) -> np.ndarray:
    """Row j = reflect-padded normalized 1-D gaussian weights contributing to
    output pixel j (matches torchvision.gaussian_blur).  Built in f64."""
    half = ksize // 2
    xs = np.arange(ksize, dtype=np.float64) - half
    k1d = np.exp(-(xs ** 2) / (2.0 * float(sigma) ** 2))
    k1d /= k1d.sum()
    m = np.zeros((n, n), dtype=np.float64)
    for j in range(n):
        for t in range(ksize):
            src = abs(j + (t - half)) % (2 * n - 2)   # reflect, no edge repeat
            if src >= n:
                src = 2 * n - 2 - src
            m[j, src] += k1d[t]
    return m


def _embedded_mat(n: int, n_pad: int, sigma: float, mult: int,
                  scale: float = 1.0, transpose: bool = False) -> jax.Array:
    """Blur matrix on the first n rows/cols, zero on the padded remainder,
    optionally scaled (opacity folded in) and pre-transposed, cast to bf16."""
    m = np.zeros((n_pad, n_pad), dtype=np.float64)
    m[:n, :n] = _gaussian_blur_matrix(n, _module_ksize(sigma, mult), sigma) * scale
    if transpose:
        m = m.T
    return jnp.asarray(m, dtype=jnp.bfloat16)


def _default_swirls(H: int, W: int):
    """Deterministic stand-ins for the 2-5 random swirls, inside the module's
    ranges: x in [0, W-1], y in the upper part, radius ~[H//8, H//4],
    strength in [0.5, 1.0]."""
    return (
        (0.25 * (W - 1), 0.20 * (H - 1), float(max(H // 5, 1)), 0.8),
        (0.70 * (W - 1), 0.30 * (H - 1), float(max(H // 4, 1)), 0.6),
        (0.50 * (W - 1), 0.10 * (H - 1), float(max(H // 8, 1)), 0.9),
    )


def _coordinate_planes(H, W, Hp, Wp):
    """All batch-invariant (coordinate-only) masks, computed once on the host
    in f64 and padded to (Hp, Wp) f32."""
    y = np.arange(H, dtype=np.float64)[:, None]
    x = np.arange(W, dtype=np.float64)[None, :]

    # steam prefactor: linspace(1,0,H) * noise_scale * (1 + 0.5*swirl_mask)
    y_lin = 1.0 - y / (H - 1)
    swirl = np.zeros((H, W), dtype=np.float64)
    for sx, sy, rad, strength in _default_swirls(H, W):
        d = np.sqrt((x - sx) ** 2 + (y - sy) ** 2)
        swirl = np.maximum(swirl, np.exp(-d / rad) * strength)
    steam_pre = (y_lin * STEAM_NOISE_SCALE) * (1.0 + 0.5 * swirl)

    # warmth factor: WARMTH * (exp(-2*dist_from_center)*0.5 + 0.5)
    yc = np.linspace(-1.0, 1.0, H)[:, None]
    xc = np.linspace(-1.0, 1.0, W)[None, :]
    wf = WARMTH * (np.exp(-2.0 * np.sqrt(xc ** 2 + yc ** 2)) * 0.5 + 0.5)

    # shadow (corner 'tl'), gaussian-blurred on the host in full precision
    sdist = np.sqrt(x ** 2 + y ** 2)
    smask = np.exp(-sdist / (SHADOW_RADIUS_SCALE * max(H, W))) * SHADOW_OPACITY
    ks = _module_ksize(SHADOW_SIGMA, 2)
    mh = _gaussian_blur_matrix(H, ks, SHADOW_SIGMA)
    mw = _gaussian_blur_matrix(W, ks, SHADOW_SIGMA)
    one_minus_shadow = 1.0 - mh @ smask @ mw.T

    # lighting: LIGHT_INTENSITY * exp(-d^2 / (2 r^2))
    ld2 = (xc - LIGHT_X) ** 2 + (yc - LIGHT_Y) ** 2
    light = LIGHT_INTENSITY * np.exp(-ld2 / (2.0 * LIGHT_RADIUS ** 2))

    def pad(a, fill=0.0):
        out = np.full((Hp, Wp), fill, dtype=np.float32)
        out[:H, :W] = a.astype(np.float32)
        return jnp.asarray(out)

    return pad(steam_pre), pad(wf), pad(one_minus_shadow, 1.0), pad(light)


# ----------------------------------------------------------------------------
# Pallas kernel: one (3, Hp, Wp) image per grid step; only per-image work
# (steam blur, bloom blur, per-channel blend chain) runs on-device.
# ----------------------------------------------------------------------------
def oven_effect_kernel(img_ref, noise_ref,
                       steam_pre_ref, wf_ref, omshadow_ref, light_ref,
                       kh_s_ref, kwT_s_ref, kh_b_ref, kwT_b_ref,
                       out_ref):
    f32 = jnp.float32
    bf16 = jnp.bfloat16

    def blur(mask_bf16, kh_ref, kwT_ref):
        # Separable reflect-padded gaussian blur as two MXU matmuls.
        # Weights are bf16 (W-matrix pre-transposed on host); f32 accumulation.
        t = jnp.dot(mask_bf16, kwT_ref[...], preferred_element_type=f32)
        return jnp.dot(kh_ref[...], t.astype(bf16), preferred_element_type=f32)

    # ---------------- steam (the only per-image mask needing a blur) --------
    # STEAM_OPACITY is folded into kh_s on the host.
    steam = blur((noise_ref[...] * steam_pre_ref[...]).astype(bf16),
                 kh_s_ref, kwT_s_ref)
    one_minus_steam = 1.0 - steam

    wf = wf_ref[...]                    # warmth factor (hoisted)
    omshadow = omshadow_ref[...]        # 1 - blurred shadow mask (hoisted)
    lm = light_ref[...]                 # lighting mask (hoisted)
    one_minus_light = 1.0 - lm
    one_plus_light = 1.0 + lm

    # ---------------- per-channel: steam -> warmth -> shadow -> lighting ----
    for c in range(3):
        x = img_ref[c]
        x = x * one_minus_steam + STEAM_COLORS[c] * steam
        x = jnp.clip(x * (1.0 + WARMTH_COEFS[c] * wf), 0.0, 1.0)
        x = x * omshadow
        x = x * one_minus_light + jnp.minimum(
            LIGHT_COLORS[c] * x * one_plus_light, 1.0)
        out_ref[c] = x

    # ---------------- bloom (needs all three post-lighting channels) --------
    lum = 0.299 * out_ref[0] + 0.587 * out_ref[1] + 0.114 * out_ref[2]
    # BLOOM_STRENGTH is folded into kh_b; bright mask emitted directly as bf16.
    glow = blur((lum > 0.7).astype(bf16), kh_b_ref, kwT_b_ref)
    for c in range(3):
        out_ref[c] = jnp.minimum(out_ref[c] + GLOW_COLORS[c] * glow, 1.0)
    # The reference's final clamp(0,1) is redundant here: every channel stays
    # >= 0 throughout and the bloom min() caps it at 1 (glow >= 0).


def _const_spec(shape):
    """Resident constant input: constant index_map (no re-DMA across grid
    steps) and single-buffered so the pipeline doesn't reserve 2x its VMEM."""
    idx = lambda n: (0,) * len(shape)
    try:
        return pl.BlockSpec(shape, idx, pipeline_mode=pl.Buffered(1))
    except TypeError:  # older JAX without pipeline_mode kwarg
        return pl.BlockSpec(shape, idx)


def enhanced_oven_effect(img: jax.Array, noise: jax.Array) -> jax.Array:
    """img: (N, 3, H, W) f32 in [0, 1]; noise: (N, H, W) f32 in [0, 1)."""
    N, C, H, W = img.shape
    assert C == 3 and H >= 2 and W >= 2

    # Lane-dense layout: pad W to a 128-multiple, H to an 8-multiple.
    Hp, Wp = _round_up(H, 8), _round_up(W, 128)
    img = img.astype(jnp.float32)
    noise = noise.astype(jnp.float32)
    if (Hp, Wp) != (H, W):
        img = jnp.pad(img, ((0, 0), (0, 0), (0, Hp - H), (0, Wp - W)))
        noise = jnp.pad(noise, ((0, 0), (0, Hp - H), (0, Wp - W)))

    # Batch-invariant coordinate planes (host precompute, loaded once).
    steam_pre, wf, omshadow, light = _coordinate_planes(H, W, Hp, Wp)

    # In-kernel blur matrices (steam + bloom only); opacities folded in,
    # W-direction pre-transposed, bf16.
    kh_s = _embedded_mat(H, Hp, STEAM_SIGMA, 3, scale=STEAM_OPACITY)
    kwT_s = _embedded_mat(W, Wp, STEAM_SIGMA, 3, transpose=True)
    kh_b = _embedded_mat(H, Hp, BLOOM_SIGMA, 3, scale=BLOOM_STRENGTH)
    kwT_b = _embedded_mat(W, Wp, BLOOM_SIGMA, 3, transpose=True)

    img_spec = pl.BlockSpec((None, 3, Hp, Wp), lambda n: (n, 0, 0, 0))
    noise_spec = pl.BlockSpec((None, Hp, Wp), lambda n: (n, 0, 0))
    out_spec = pl.BlockSpec((None, 3, Hp, Wp), lambda n: (n, 0, 0, 0))
    plane_spec = _const_spec((Hp, Wp))
    kh_spec = _const_spec((Hp, Hp))
    kw_spec = _const_spec((Wp, Wp))

    # VMEM budget: double-buffered img/out/noise blocks, single-buffered
    # constants, headroom for f32 temporaries; clamped to the chip's actual
    # VMEM capacity (64 MiB on v7x, 128 MiB on v5e/v6e).
    stream_bytes = (2 * 3 * Hp * Wp * 4 + Hp * Wp * 4) * 2
    const_bytes = 4 * Hp * Wp * 4 + (Hp * Hp + Wp * Wp) * 2 * 2
    temps_bytes = 10 * Hp * Wp * 4
    want = int((stream_bytes + const_bytes + temps_bytes) * 1.3)
    try:
        cap = int(pltpu.get_tpu_info().vmem_capacity_bytes)
    except Exception:
        cap = 64 << 20  # assume the smallest (v7x) if the query is unavailable
    vmem_limit = int(min(cap * 3 // 4, max(32 << 20, want)))

    out = pl.pallas_call(
        oven_effect_kernel,
        out_shape=jax.ShapeDtypeStruct((N, 3, Hp, Wp), jnp.float32),
        grid=(N,),
        in_specs=[img_spec, noise_spec,
                  plane_spec, plane_spec, plane_spec, plane_spec,
                  kh_spec, kw_spec, kh_spec, kw_spec],
        out_specs=out_spec,
        compiler_params=pltpu.CompilerParams(
            dimension_semantics=("parallel",),
            vmem_limit_bytes=vmem_limit),
    )(img, noise, steam_pre, wf, omshadow, light, kh_s, kwT_s, kh_b, kwT_b)

    if (Hp, Wp) != (H, W):
        out = out[:, :, :H, :W]
    return out


if __name__ == "__main__":
    N, H, W = 2, 128, 128
    key = jax.random.PRNGKey(0)
    k_img, k_noise = jax.random.split(key)
    img = jax.random.uniform(k_img, (N, 3, H, W), dtype=jnp.float32)    # in [0,1)
    noise = jax.random.uniform(k_noise, (N, H, W), dtype=jnp.float32)   # torch.rand

    out = jax.block_until_ready(enhanced_oven_effect(img, noise))
    assert out.shape == (N, 3, H, W) and out.dtype == jnp.float32
    assert bool(jnp.all(out >= 0.0)) and bool(jnp.all(out <= 1.0))
    print("KERNEL_OK")
</pallas_src>

<mosaic_0001>
module attributes {stable_mosaic.version = 11 : i64} {
  func.func @oven_effect_kernel(%arg0: i32, %arg1: memref<1x3x128x128xf32, #tpu.memory_space<vmem>>, %arg2: memref<1x128x128xf32, #tpu.memory_space<vmem>>, %arg3: memref<128x128xf32, #tpu.memory_space<vmem>>, %arg4: memref<128x128xf32, #tpu.memory_space<vmem>>, %arg5: memref<128x128xf32, #tpu.memory_space<vmem>>, %arg6: memref<128x128xf32, #tpu.memory_space<vmem>>, %arg7: memref<128x128xbf16, #tpu.memory_space<vmem>>, %arg8: memref<128x128xbf16, #tpu.memory_space<vmem>>, %arg9: memref<128x128xbf16, #tpu.memory_space<vmem>>, %arg10: memref<128x128xbf16, #tpu.memory_space<vmem>>, %arg11: memref<1x3x128x128xf32, #tpu.memory_space<vmem>>) attributes {dimension_semantics = [#tpu.dimension_semantics<parallel>], iteration_bounds = array<i64: 2>, scalar_prefetch = 0 : i64, scratch_operands = 0 : i64, tpu.core_type = #tpu.core_type<tc>, window_params = [{transform_indices = @transform_0, window_bounds = array<i64: 1, 3, 128, 128>}, {transform_indices = @transform_1, window_bounds = array<i64: 1, 128, 128>}, {pipeline_mode = #tpu.pipeline_mode<synchronous>, transform_indices = @transform_2, window_bounds = array<i64: 128, 128>}, {pipeline_mode = #tpu.pipeline_mode<synchronous>, transform_indices = @transform_3, window_bounds = array<i64: 128, 128>}, {pipeline_mode = #tpu.pipeline_mode<synchronous>, transform_indices = @transform_4, window_bounds = array<i64: 128, 128>}, {pipeline_mode = #tpu.pipeline_mode<synchronous>, transform_indices = @transform_5, window_bounds = array<i64: 128, 128>}, {pipeline_mode = #tpu.pipeline_mode<synchronous>, transform_indices = @transform_6, window_bounds = array<i64: 128, 128>}, {pipeline_mode = #tpu.pipeline_mode<synchronous>, transform_indices = @transform_7, window_bounds = array<i64: 128, 128>}, {pipeline_mode = #tpu.pipeline_mode<synchronous>, transform_indices = @transform_8, window_bounds = array<i64: 128, 128>}, {pipeline_mode = #tpu.pipeline_mode<synchronous>, transform_indices = @transform_9, window_bounds = array<i64: 128, 128>}, {transform_indices = @transform_10, window_bounds = array<i64: 1, 3, 128, 128>}]} {
    %c0 = arith.constant 0 : index
    %c0_0 = arith.constant 0 : index
    %c0_1 = arith.constant 0 : index
    %0 = vector.load %arg2[%c0, %c0_0, %c0_1] : memref<1x128x128xf32, #tpu.memory_space<vmem>>, vector<1x128x128xf32>
    %1 = vector.shape_cast %0 : vector<1x128x128xf32> to vector<128x128xf32>
    %c0_2 = arith.constant 0 : index
    %c0_3 = arith.constant 0 : index
    %2 = vector.load %arg3[%c0_2, %c0_3] : memref<128x128xf32, #tpu.memory_space<vmem>>, vector<128x128xf32>
    %3 = arith.mulf %1, %2 : vector<128x128xf32>
    %4 = arith.truncf %3 : vector<128x128xf32> to vector<128x128xbf16>
    %c0_4 = arith.constant 0 : index
    %c0_5 = arith.constant 0 : index
    %5 = vector.load %arg8[%c0_4, %c0_5] : memref<128x128xbf16, #tpu.memory_space<vmem>>, vector<128x128xbf16>
    %cst = arith.constant dense<0.000000e+00> : vector<128x128xf32>
    %6 = tpu.matmul %4, %5, %cst {dimension_numbers = #tpu.dot_dimension_numbers<[1], [0], [0], [1], [0, 0, 1, 1], [], []>} : vector<128x128xbf16>, vector<128x128xbf16>, vector<128x128xf32> -> vector<128x128xf32>
    %c0_6 = arith.constant 0 : index
    %c0_7 = arith.constant 0 : index
    %7 = vector.load %arg7[%c0_6, %c0_7] : memref<128x128xbf16, #tpu.memory_space<vmem>>, vector<128x128xbf16>
    %8 = arith.truncf %6 : vector<128x128xf32> to vector<128x128xbf16>
    %cst_8 = arith.constant dense<0.000000e+00> : vector<128x128xf32>
    %9 = tpu.matmul %7, %8, %cst_8 {dimension_numbers = #tpu.dot_dimension_numbers<[1], [0], [0], [1], [0, 0, 1, 1], [], []>} : vector<128x128xbf16>, vector<128x128xbf16>, vector<128x128xf32> -> vector<128x128xf32>
    %cst_9 = arith.constant 1.000000e+00 : f32
    %10 = vector.broadcast %cst_9 : f32 to vector<128x128xf32>
    %11 = arith.subf %10, %9 : vector<128x128xf32>
    %c0_10 = arith.constant 0 : index
    %c0_11 = arith.constant 0 : index
    %12 = vector.load %arg4[%c0_10, %c0_11] : memref<128x128xf32, #tpu.memory_space<vmem>>, vector<128x128xf32>
    %c0_12 = arith.constant 0 : index
    %c0_13 = arith.constant 0 : index
    %13 = vector.load %arg5[%c0_12, %c0_13] : memref<128x128xf32, #tpu.memory_space<vmem>>, vector<128x128xf32>
    %c0_14 = arith.constant 0 : index
    %c0_15 = arith.constant 0 : index
    %14 = vector.load %arg6[%c0_14, %c0_15] : memref<128x128xf32, #tpu.memory_space<vmem>>, vector<128x128xf32>
    %cst_16 = arith.constant 1.000000e+00 : f32
    %15 = vector.broadcast %cst_16 : f32 to vector<128x128xf32>
    %16 = arith.subf %15, %14 : vector<128x128xf32>
    %cst_17 = arith.constant 1.000000e+00 : f32
    %17 = vector.broadcast %cst_17 : f32 to vector<128x128xf32>
    %18 = arith.addf %17, %14 : vector<128x128xf32>
    %c0_18 = arith.constant 0 : index
    %c0_19 = arith.constant 0 : index
    %c0_20 = arith.constant 0 : index
    %c0_21 = arith.constant 0 : index
    %19 = vector.load %arg1[%c0_18, %c0_19, %c0_20, %c0_21] : memref<1x3x128x128xf32, #tpu.memory_space<vmem>>, vector<1x1x128x128xf32>
    %20 = vector.shape_cast %19 : vector<1x1x128x128xf32> to vector<128x128xf32>
    %21 = arith.mulf %20, %11 : vector<128x128xf32>
    %cst_22 = arith.constant 1.000000e+00 : f32
    %22 = vector.broadcast %cst_22 : f32 to vector<128x128xf32>
    %23 = arith.mulf %22, %9 : vector<128x128xf32>
    %24 = arith.addf %21, %23 : vector<128x128xf32>
    %cst_23 = arith.constant 1.000000e+00 : f32
    %25 = vector.broadcast %cst_23 : f32 to vector<128x128xf32>
    %26 = arith.mulf %25, %12 : vector<128x128xf32>
    %cst_24 = arith.constant 1.000000e+00 : f32
    %27 = vector.broadcast %cst_24 : f32 to vector<128x128xf32>
    %28 = arith.addf %27, %26 : vector<128x128xf32>
    %29 = arith.mulf %24, %28 : vector<128x128xf32>
    %cst_25 = arith.constant 0.000000e+00 : f32
    %cst_26 = arith.constant 1.000000e+00 : f32
    %30 = vector.broadcast %cst_25 : f32 to vector<128x128xf32>
    %31 = arith.maximumf %30, %29 : vector<128x128xf32>
    %32 = vector.broadcast %cst_26 : f32 to vector<128x128xf32>
    %33 = arith.minimumf %32, %31 : vector<128x128xf32>
    %34 = arith.mulf %33, %13 : vector<128x128xf32>
    %35 = arith.mulf %34, %16 : vector<128x128xf32>
    %cst_27 = arith.constant 1.050000e+00 : f32
    %36 = vector.broadcast %cst_27 : f32 to vector<128x128xf32>
    %37 = arith.mulf %36, %34 : vector<128x128xf32>
    %38 = arith.mulf %37, %18 : vector<128x128xf32>
    %cst_28 = arith.constant 1.000000e+00 : f32
    %39 = vector.broadcast %cst_28 : f32 to vector<128x128xf32>
    %40 = arith.minimumf %38, %39 : vector<128x128xf32>
    %41 = arith.addf %35, %40 : vector<128x128xf32>
    %c0_29 = arith.constant 0 : index
    %c0_30 = arith.constant 0 : index
    %c0_31 = arith.constant 0 : index
    %c0_32 = arith.constant 0 : index
    %42 = vector.load %arg11[%c0_29, %c0_30, %c0_31, %c0_32] : memref<1x3x128x128xf32, #tpu.memory_space<vmem>>, vector<1x1x128x128xf32>
    %43 = vector.shape_cast %42 : vector<1x1x128x128xf32> to vector<128x128xf32>
    %44 = vector.shape_cast %41 : vector<128x128xf32> to vector<1x1x128x128xf32>
    tpu.vector_store %arg11[%c0_29, %c0_30, %c0_31, %c0_32], %44 {strides = array<i32>} : memref<1x3x128x128xf32, #tpu.memory_space<vmem>>, vector<1x1x128x128xf32>,
    %c0_33 = arith.constant 0 : index
    %c1 = arith.constant 1 : index
    %c0_34 = arith.constant 0 : index
    %c0_35 = arith.constant 0 : index
    %45 = vector.load %arg1[%c0_33, %c1, %c0_34, %c0_35] : memref<1x3x128x128xf32, #tpu.memory_space<vmem>>, vector<1x1x128x128xf32>
    %46 = vector.shape_cast %45 : vector<1x1x128x128xf32> to vector<128x128xf32>
    %47 = arith.mulf %46, %11 : vector<128x128xf32>
    %cst_36 = arith.constant 1.000000e+00 : f32
    %48 = vector.broadcast %cst_36 : f32 to vector<128x128xf32>
    %49 = arith.mulf %48, %9 : vector<128x128xf32>
    %50 = arith.addf %47, %49 : vector<128x128xf32>
    %cst_37 = arith.constant 3.000000e-01 : f32
    %51 = vector.broadcast %cst_37 : f32 to vector<128x128xf32>
    %52 = arith.mulf %51, %12 : vector<128x128xf32>
    %cst_38 = arith.constant 1.000000e+00 : f32
    %53 = vector.broadcast %cst_38 : f32 to vector<128x128xf32>
    %54 = arith.addf %53, %52 : vector<128x128xf32>
    %55 = arith.mulf %50, %54 : vector<128x128xf32>
    %cst_39 = arith.constant 0.000000e+00 : f32
    %cst_40 = arith.constant 1.000000e+00 : f32
    %56 = vector.broadcast %cst_39 : f32 to vector<128x128xf32>
    %57 = arith.maximumf %56, %55 : vector<128x128xf32>
    %58 = vector.broadcast %cst_40 : f32 to vector<128x128xf32>
    %59 = arith.minimumf %58, %57 : vector<128x128xf32>
    %60 = arith.mulf %59, %13 : vector<128x128xf32>
    %61 = arith.mulf %60, %16 : vector<128x128xf32>
    %cst_41 = arith.constant 1.030000e+00 : f32
    %62 = vector.broadcast %cst_41 : f32 to vector<128x128xf32>
    %63 = arith.mulf %62, %60 : vector<128x128xf32>
    %64 = arith.mulf %63, %18 : vector<128x128xf32>
    %cst_42 = arith.constant 1.000000e+00 : f32
    %65 = vector.broadcast %cst_42 : f32 to vector<128x128xf32>
    %66 = arith.minimumf %64, %65 : vector<128x128xf32>
    %67 = arith.addf %61, %66 : vector<128x128xf32>
    %c0_43 = arith.constant 0 : index
    %c1_44 = arith.constant 1 : index
    %c0_45 = arith.constant 0 : index
    %c0_46 = arith.constant 0 : index
    %68 = vector.load %arg11[%c0_43, %c1_44, %c0_45, %c0_46] : memref<1x3x128x128xf32, #tpu.memory_space<vmem>>, vector<1x1x128x128xf32>
    %69 = vector.shape_cast %68 : vector<1x1x128x128xf32> to vector<128x128xf32>
    %70 = vector.shape_cast %67 : vector<128x128xf32> to vector<1x1x128x128xf32>
    tpu.vector_store %arg11[%c0_43, %c1_44, %c0_45, %c0_46], %70 {strides = array<i32>} : memref<1x3x128x128xf32, #tpu.memory_space<vmem>>, vector<1x1x128x128xf32>,
    %c0_47 = arith.constant 0 : index
    %c2 = arith.constant 2 : index
    %c0_48 = arith.constant 0 : index
    %c0_49 = arith.constant 0 : index
    %71 = vector.load %arg1[%c0_47, %c2, %c0_48, %c0_49] : memref<1x3x128x128xf32, #tpu.memory_space<vmem>>, vector<1x1x128x128xf32>
    %72 = vector.shape_cast %71 : vector<1x1x128x128xf32> to vector<128x128xf32>
    %73 = arith.mulf %72, %11 : vector<128x128xf32>
    %cst_50 = arith.constant 1.050000e+00 : f32
    %74 = vector.broadcast %cst_50 : f32 to vector<128x128xf32>
    %75 = arith.mulf %74, %9 : vector<128x128xf32>
    %76 = arith.addf %73, %75 : vector<128x128xf32>
    %cst_51 = arith.constant -2.000000e-01 : f32
    %77 = vector.broadcast %cst_51 : f32 to vector<128x128xf32>
    %78 = arith.mulf %77, %12 : vector<128x128xf32>
    %cst_52 = arith.constant 1.000000e+00 : f32
    %79 = vector.broadcast %cst_52 : f32 to vector<128x128xf32>
    %80 = arith.addf %79, %78 : vector<128x128xf32>
    %81 = arith.mulf %76, %80 : vector<128x128xf32>
    %cst_53 = arith.constant 0.000000e+00 : f32
    %cst_54 = arith.constant 1.000000e+00 : f32
    %82 = vector.broadcast %cst_53 : f32 to vector<128x128xf32>
    %83 = arith.maximumf %82, %81 : vector<128x128xf32>
    %84 = vector.broadcast %cst_54 : f32 to vector<128x128xf32>
    %85 = arith.minimumf %84, %83 : vector<128x128xf32>
    %86 = arith.mulf %85, %13 : vector<128x128xf32>
    %87 = arith.mulf %86, %16 : vector<128x128xf32>
    %cst_55 = arith.constant 1.000000e+00 : f32
    %88 = vector.broadcast %cst_55 : f32 to vector<128x128xf32>
    %89 = arith.mulf %88, %86 : vector<128x128xf32>
    %90 = arith.mulf %89, %18 : vector<128x128xf32>
    %cst_56 = arith.constant 1.000000e+00 : f32
    %91 = vector.broadcast %cst_56 : f32 to vector<128x128xf32>
    %92 = arith.minimumf %90, %91 : vector<128x128xf32>
    %93 = arith.addf %87, %92 : vector<128x128xf32>
    %c0_57 = arith.constant 0 : index
    %c2_58 = arith.constant 2 : index
    %c0_59 = arith.constant 0 : index
    %c0_60 = arith.constant 0 : index
    %94 = vector.load %arg11[%c0_57, %c2_58, %c0_59, %c0_60] : memref<1x3x128x128xf32, #tpu.memory_space<vmem>>, vector<1x1x128x128xf32>
    %95 = vector.shape_cast %94 : vector<1x1x128x128xf32> to vector<128x128xf32>
    %96 = vector.shape_cast %93 : vector<128x128xf32> to vector<1x1x128x128xf32>
    tpu.vector_store %arg11[%c0_57, %c2_58, %c0_59, %c0_60], %96 {strides = array<i32>} : memref<1x3x128x128xf32, #tpu.memory_space<vmem>>, vector<1x1x128x128xf32>,
    %c0_61 = arith.constant 0 : index
    %c0_62 = arith.constant 0 : index
    %c0_63 = arith.constant 0 : index
    %c0_64 = arith.constant 0 : index
    %97 = vector.load %arg11[%c0_61, %c0_62, %c0_63, %c0_64] : memref<1x3x128x128xf32, #tpu.memory_space<vmem>>, vector<1x1x128x128xf32>
    %98 = vector.shape_cast %97 : vector<1x1x128x128xf32> to vector<128x128xf32>
    %cst_65 = arith.constant 2.990000e-01 : f32
    %99 = vector.broadcast %cst_65 : f32 to vector<128x128xf32>
    %100 = arith.mulf %99, %98 : vector<128x128xf32>
    %c0_66 = arith.constant 0 : index
    %c1_67 = arith.constant 1 : index
    %c0_68 = arith.constant 0 : index
    %c0_69 = arith.constant 0 : index
    %101 = vector.load %arg11[%c0_66, %c1_67, %c0_68, %c0_69] : memref<1x3x128x128xf32, #tpu.memory_space<vmem>>, vector<1x1x128x128xf32>
    %102 = vector.shape_cast %101 : vector<1x1x128x128xf32> to vector<128x128xf32>
    %cst_70 = arith.constant 5.870000e-01 : f32
    %103 = vector.broadcast %cst_70 : f32 to vector<128x128xf32>
    %104 = arith.mulf %103, %102 : vector<128x128xf32>
    %105 = arith.addf %100, %104 : vector<128x128xf32>
    %c0_71 = arith.constant 0 : index
    %c2_72 = arith.constant 2 : index
    %c0_73 = arith.constant 0 : index
    %c0_74 = arith.constant 0 : index
    %106 = vector.load %arg11[%c0_71, %c2_72, %c0_73, %c0_74] : memref<1x3x128x128xf32, #tpu.memory_space<vmem>>, vector<1x1x128x128xf32>
    %107 = vector.shape_cast %106 : vector<1x1x128x128xf32> to vector<128x128xf32>
    %cst_75 = arith.constant 1.140000e-01 : f32
    %108 = vector.broadcast %cst_75 : f32 to vector<128x128xf32>
    %109 = arith.mulf %108, %107 : vector<128x128xf32>
    %110 = arith.addf %105, %109 : vector<128x128xf32>
    %cst_76 = arith.constant 0.699999988 : f32
    %111 = vector.broadcast %cst_76 : f32 to vector<128x128xf32>
    %112 = arith.cmpf ogt, %110, %111 : vector<128x128xf32>
    %113 = arith.extui %112 : vector<128x128xi1> to vector<128x128xi32>
    %114 = arith.sitofp %113 : vector<128x128xi32> to vector<128x128xf32>
    %115 = arith.truncf %114 : vector<128x128xf32> to vector<128x128xbf16>
    %c0_77 = arith.constant 0 : index
    %c0_78 = arith.constant 0 : index
    %116 = vector.load %arg10[%c0_77, %c0_78] : memref<128x128xbf16, #tpu.memory_space<vmem>>, vector<128x128xbf16>
    %cst_79 = arith.constant dense<0.000000e+00> : vector<128x128xf32>
    %117 = tpu.matmul %115, %116, %cst_79 {dimension_numbers = #tpu.dot_dimension_numbers<[1], [0], [0], [1], [0, 0, 1, 1], [], []>} : vector<128x128xbf16>, vector<128x128xbf16>, vector<128x128xf32> -> vector<128x128xf32>
    %c0_80 = arith.constant 0 : index
    %c0_81 = arith.constant 0 : index
    %118 = vector.load %arg9[%c0_80, %c0_81] : memref<128x128xbf16, #tpu.memory_space<vmem>>, vector<128x128xbf16>
    %119 = arith.truncf %117 : vector<128x128xf32> to vector<128x128xbf16>
    %cst_82 = arith.constant dense<0.000000e+00> : vector<128x128xf32>
    %120 = tpu.matmul %118, %119, %cst_82 {dimension_numbers = #tpu.dot_dimension_numbers<[1], [0], [0], [1], [0, 0, 1, 1], [], []>} : vector<128x128xbf16>, vector<128x128xbf16>, vector<128x128xf32> -> vector<128x128xf32>
    %c0_83 = arith.constant 0 : index
    %c0_84 = arith.constant 0 : index
    %c0_85 = arith.constant 0 : index
    %c0_86 = arith.constant 0 : index
    %121 = vector.load %arg11[%c0_83, %c0_84, %c0_85, %c0_86] : memref<1x3x128x128xf32, #tpu.memory_space<vmem>>, vector<1x1x128x128xf32>
    %122 = vector.shape_cast %121 : vector<1x1x128x128xf32> to vector<128x128xf32>
    %cst_87 = arith.constant 1.050000e+00 : f32
    %123 = vector.broadcast %cst_87 : f32 to vector<128x128xf32>
    %124 = arith.mulf %123, %120 : vector<128x128xf32>
    %125 = arith.addf %122, %124 : vector<128x128xf32>
    %cst_88 = arith.constant 1.000000e+00 : f32
    %126 = vector.broadcast %cst_88 : f32 to vector<128x128xf32>
    %127 = arith.minimumf %125, %126 : vector<128x128xf32>
    %c0_89 = arith.constant 0 : index
    %c0_90 = arith.constant 0 : index
    %c0_91 = arith.constant 0 : index
    %c0_92 = arith.constant 0 : index
    %128 = vector.load %arg11[%c0_89, %c0_90, %c0_91, %c0_92] : memref<1x3x128x128xf32, #tpu.memory_space<vmem>>, vector<1x1x128x128xf32>
    %129 = vector.shape_cast %128 : vector<1x1x128x128xf32> to vector<128x128xf32>
    %130 = vector.shape_cast %127 : vector<128x128xf32> to vector<1x1x128x128xf32>
    tpu.vector_store %arg11[%c0_89, %c0_90, %c0_91, %c0_92], %130 {strides = array<i32>} : memref<1x3x128x128xf32, #tpu.memory_space<vmem>>, vector<1x1x128x128xf32>,
    %c0_93 = arith.constant 0 : index
    %c1_94 = arith.constant 1 : index
    %c0_95 = arith.constant 0 : index
    %c0_96 = arith.constant 0 : index
    %131 = vector.load %arg11[%c0_93, %c1_94, %c0_95, %c0_96] : memref<1x3x128x128xf32, #tpu.memory_space<vmem>>, vector<1x1x128x128xf32>
    %132 = vector.shape_cast %131 : vector<1x1x128x128xf32> to vector<128x128xf32>
    %cst_97 = arith.constant 1.030000e+00 : f32
    %133 = vector.broadcast %cst_97 : f32 to vector<128x128xf32>
    %134 = arith.mulf %133, %120 : vector<128x128xf32>
    %135 = arith.addf %132, %134 : vector<128x128xf32>
    %cst_98 = arith.constant 1.000000e+00 : f32
    %136 = vector.broadcast %cst_98 : f32 to vector<128x128xf32>
    %137 = arith.minimumf %135, %136 : vector<128x128xf32>
    %c0_99 = arith.constant 0 : index
    %c1_100 = arith.constant 1 : index
    %c0_101 = arith.constant 0 : index
    %c0_102 = arith.constant 0 : index
    %138 = vector.load %arg11[%c0_99, %c1_100, %c0_101, %c0_102] : memref<1x3x128x128xf32, #tpu.memory_space<vmem>>, vector<1x1x128x128xf32>
    %139 = vector.shape_cast %138 : vector<1x1x128x128xf32> to vector<128x128xf32>
    %140 = vector.shape_cast %137 : vector<128x128xf32> to vector<1x1x128x128xf32>
    tpu.vector_store %arg11[%c0_99, %c1_100, %c0_101, %c0_102], %140 {strides = array<i32>} : memref<1x3x128x128xf32, #tpu.memory_space<vmem>>, vector<1x1x128x128xf32>,
    %c0_103 = arith.constant 0 : index
    %c2_104 = arith.constant 2 : index
    %c0_105 = arith.constant 0 : index
    %c0_106 = arith.constant 0 : index
    %141 = vector.load %arg11[%c0_103, %c2_104, %c0_105, %c0_106] : memref<1x3x128x128xf32, #tpu.memory_space<vmem>>, vector<1x1x128x128xf32>
    %142 = vector.shape_cast %141 : vector<1x1x128x128xf32> to vector<128x128xf32>
    %cst_107 = arith.constant 0.949999988 : f32
    %143 = vector.broadcast %cst_107 : f32 to vector<128x128xf32>
    %144 = arith.mulf %143, %120 : vector<128x128xf32>
    %145 = arith.addf %142, %144 : vector<128x128xf32>
    %cst_108 = arith.constant 1.000000e+00 : f32
    %146 = vector.broadcast %cst_108 : f32 to vector<128x128xf32>
    %147 = arith.minimumf %145, %146 : vector<128x128xf32>
    %c0_109 = arith.constant 0 : index
    %c2_110 = arith.constant 2 : index
    %c0_111 = arith.constant 0 : index
    %c0_112 = arith.constant 0 : index
    %148 = vector.load %arg11[%c0_109, %c2_110, %c0_111, %c0_112] : memref<1x3x128x128xf32, #tpu.memory_space<vmem>>, vector<1x1x128x128xf32>
    %149 = vector.shape_cast %148 : vector<1x1x128x128xf32> to vector<128x128xf32>
    %150 = vector.shape_cast %147 : vector<128x128xf32> to vector<1x1x128x128xf32>
    tpu.vector_store %arg11[%c0_109, %c2_110, %c0_111, %c0_112], %150 {strides = array<i32>} : memref<1x3x128x128xf32, #tpu.memory_space<vmem>>, vector<1x1x128x128xf32>,
    return
  }
  func.func @transform_0(%arg0: i32) -> (i32, i32, i32, i32) {
    %c0_i32 = arith.constant 0 : i32
    %c0_i32_0 = arith.constant 0 : i32
    %c0_i32_1 = arith.constant 0 : i32
    %c0_i32_2 = arith.constant 0 : i32
    return %arg0, %c0_i32, %c0_i32_0, %c0_i32_1 : i32, i32, i32, i32
  }
  func.func @transform_1(%arg0: i32) -> (i32, i32, i32) {
    %c0_i32 = arith.constant 0 : i32
    %c0_i32_0 = arith.constant 0 : i32
    %c0_i32_1 = arith.constant 0 : i32
    return %arg0, %c0_i32, %c0_i32_0 : i32, i32, i32
  }
  func.func @transform_2(%arg0: i32) -> (i32, i32) {
    %c0_i32 = arith.constant 0 : i32
    %c0_i32_0 = arith.constant 0 : i32
    %c0_i32_1 = arith.constant 0 : i32
    return %c0_i32, %c0_i32_0 : i32, i32
  }
  func.func @transform_3(%arg0: i32) -> (i32, i32) {
    %c0_i32 = arith.constant 0 : i32
    %c0_i32_0 = arith.constant 0 : i32
    %c0_i32_1 = arith.constant 0 : i32
    return %c0_i32, %c0_i32_0 : i32, i32
  }
  func.func @transform_4(%arg0: i32) -> (i32, i32) {
    %c0_i32 = arith.constant 0 : i32
    %c0_i32_0 = arith.constant 0 : i32
    %c0_i32_1 = arith.constant 0 : i32
    return %c0_i32, %c0_i32_0 : i32, i32
  }
  func.func @transform_5(%arg0: i32) -> (i32, i32) {
    %c0_i32 = arith.constant 0 : i32
    %c0_i32_0 = arith.constant 0 : i32
    %c0_i32_1 = arith.constant 0 : i32
    return %c0_i32, %c0_i32_0 : i32, i32
  }
  func.func @transform_6(%arg0: i32) -> (i32, i32) {
    %c0_i32 = arith.constant 0 : i32
    %c0_i32_0 = arith.constant 0 : i32
    %c0_i32_1 = arith.constant 0 : i32
    return %c0_i32, %c0_i32_0 : i32, i32
  }
  func.func @transform_7(%arg0: i32) -> (i32, i32) {
    %c0_i32 = arith.constant 0 : i32
    %c0_i32_0 = arith.constant 0 : i32
    %c0_i32_1 = arith.constant 0 : i32
    return %c0_i32, %c0_i32_0 : i32, i32
  }
  func.func @transform_8(%arg0: i32) -> (i32, i32) {
    %c0_i32 = arith.constant 0 : i32
    %c0_i32_0 = arith.constant 0 : i32
    %c0_i32_1 = arith.constant 0 : i32
    return %c0_i32, %c0_i32_0 : i32, i32
  }
  func.func @transform_9(%arg0: i32) -> (i32, i32) {
    %c0_i32 = arith.constant 0 : i32
    %c0_i32_0 = arith.constant 0 : i32
    %c0_i32_1 = arith.constant 0 : i32
    return %c0_i32, %c0_i32_0 : i32, i32
  }
  func.func @transform_10(%arg0: i32) -> (i32, i32, i32, i32) {
    %c0_i32 = arith.constant 0 : i32
    %c0_i32_0 = arith.constant 0 : i32
    %c0_i32_1 = arith.constant 0 : i32
    %c0_i32_2 = arith.constant 0 : i32
    return %arg0, %c0_i32, %c0_i32_0, %c0_i32_1 : i32, i32, i32, i32
  }
}

</mosaic_0001>

<llo_original>
// kernel: tpu_custom_call.1
$region0: #{tpu_custom_call.1}
  #allocation0 [shape = 'u32[]', space=smem, size = 0x4, offset = 0x4, fixed_abs, tag = 'smem constant byte address 0x4 - core index']
  #allocation1 [shape = 'u32[72,128]{1,0:T(1,128)}', space=vmem, size = 0x9000, scoped, tag = 'internal scratch']
  %s0 = inlined_call_operand.hbm [shape: f32[2,3,128,128], index: 0, kind: input, shape index: {}]
  %s1 = inlined_call_operand.hbm [shape: f32[2,128,128], index: 1, kind: input, shape index: {}]
  %s2 = inlined_call_operand.hbm [shape: f32[128,128], index: 2, kind: input, shape index: {}]
  %s3 = inlined_call_operand.hbm [shape: f32[128,128], index: 3, kind: input, shape index: {}]
  %s4 = inlined_call_operand.hbm [shape: f32[128,128], index: 4, kind: input, shape index: {}]
  %s5 = inlined_call_operand.hbm [shape: f32[128,128], index: 5, kind: input, shape index: {}]
  %s6 = inlined_call_operand.hbm [shape: bf16[128,128], index: 6, kind: input, shape index: {}]
  %s7 = inlined_call_operand.hbm [shape: bf16[128,128], index: 7, kind: input, shape index: {}]
  %s8 = inlined_call_operand.hbm [shape: bf16[128,128], index: 8, kind: input, shape index: {}]
  %s9 = inlined_call_operand.hbm [shape: bf16[128,128], index: 9, kind: input, shape index: {}]
  %s10 = inlined_call_operand.hbm [shape: f32[2,3,128,128], index: 10, kind: output, shape index: {}]
  %s11 = sld [smem:[#allocation0]]
  $region113: #{tpu_custom_call.1} parent=0
    _
  %s13 = ssub.s32 1, %s11
  %s14 = scalar_select 0, %s13, %s11
  $region1: #{tpu_custom_call.1} parent=0
    #allocation2 [shape = 'u8[393216]{0}', space=vmem, size = 0x60000, scoped, tag = 'input window, operand 0']
    #allocation3 [shape = 's32[2]{0}', space=sflag, size = 0x8, scoped, tag = 'scoped memory for tpu_custom_call.1']
    #allocation4 [shape = 's32[2]{0}', space=sflag, size = 0x8, scoped, tag = 'scoped memory for tpu_custom_call.1']
    #allocation5 [shape = 'u8[131072]{0}', space=vmem, size = 0x20000, scoped, tag = 'input window, operand 1']
    #allocation6 [shape = 's32[2]{0}', space=sflag, size = 0x8, scoped, tag = 'scoped memory for tpu_custom_call.1']
    #allocation7 [shape = 'u8[65536]{0}', space=vmem, size = 0x10000, scoped, tag = 'input window, operand 2, single buffered']
    #allocation8 [shape = 'u8[65536]{0}', space=vmem, size = 0x10000, scoped, tag = 'input window, operand 3, single buffered']
    #allocation9 [shape = 's32[1]{0}', space=sflag, size = 0x4, scoped, tag = 'scoped memory for tpu_custom_call.1']
    #allocation10 [shape = 'u8[65536]{0}', space=vmem, size = 0x10000, scoped, tag = 'input window, operand 4, single buffered']
    #allocation11 [shape = 'u8[65536]{0}', space=vmem, size = 0x10000, scoped, tag = 'input window, operand 5, single buffered']
    #allocation12 [shape = 's32[1]{0}', space=sflag, size = 0x4, scoped, tag = 'scoped memory for tpu_custom_call.1']
    #allocation13 [shape = 'u8[32768]{0}', space=vmem, size = 0x8000, scoped, tag = 'input window, operand 6, single buffered']
    #allocation14 [shape = 'u8[32768]{0}', space=vmem, size = 0x8000, scoped, tag = 'input window, operand 7, single buffered']
    #allocation15 [shape = 's32[1]{0}', space=sflag, size = 0x4, scoped, tag = 'scoped memory for tpu_custom_call.1']
    #allocation16 [shape = 'u8[32768]{0}', space=vmem, size = 0x8000, scoped, tag = 'input window, operand 8, single buffered']
    #allocation17 [shape = 'u8[32768]{0}', space=vmem, size = 0x8000, scoped, tag = 'input window, operand 9, single buffered']
    #allocation18 [shape = 's32[1]{0}', space=sflag, size = 0x4, scoped, tag = 'scoped memory for tpu_custom_call.1']
    #allocation19 [shape = 'u8[393216]{0}', space=vmem, size = 0x60000, scoped, tag = 'output window, operand 0']
    %15 = vsyncpa [#allocation3], 0
    %s16 = scalar_lea.sflag [#allocation3], 1
    %17 = vsyncpa %s16, 0
    %18 = vsyncpa [#allocation6], 0
    %s19 = scalar_lea.sflag [#allocation6], 1
    %20 = vsyncpa %s19, 0
    %21 = vsyncpa [#allocation9], 0
    %22 = vsyncpa [#allocation12], 0
    %23 = vsyncpa [#allocation15], 0
    %24 = vsyncpa [#allocation18], 0
    %25 = vsyncpa [#allocation4], 0
    %s26 = scalar_lea.sflag [#allocation4], 1
    %27 = vsyncpa %s26, 0
    loop: start=0, step=1, limit=4
    $region2: #{tpu_custom_call.1} parent=1 // loop_pre_header
      _
    $region3: #{tpu_custom_call.1} parent=1 // loop_header
      %s29 = sphi 0, %s33
      %p30 = scmp.ge.s32.totalorder %s29, 4
      %s39 = sphi 0, %s41
      %s42 = sphi 0, %s39
      %s43 = sphi 0, %s42
      %s59 = sphi 0, %s43
      %s65 = sphi 0, %s67
      %s68 = sphi 0, %s65
      %s69 = sphi 0, %s68
      %s85 = sphi 0, %s69
      %s89 = sphi 0, %s89
      %s91 = sphi 0, %s89
      %s92 = sphi 0, %s91
      %s106 = sphi 0, %s92
      %s110 = sphi 0, %s110
      %s112 = sphi 0, %s110
      %s113 = sphi 0, %s112
      %s127 = sphi 0, %s113
      %s131 = sphi 0, %s131
      %s133 = sphi 0, %s131
      %s134 = sphi 0, %s133
      %s148 = sphi 0, %s134
      %s152 = sphi 0, %s152
      %s154 = sphi 0, %s152
      %s155 = sphi 0, %s154
      %s169 = sphi 0, %s155
      %s173 = sphi 0, %s173
      %s175 = sphi 0, %s173
      %s176 = sphi 0, %s175
      %s190 = sphi 0, %s176
      %s194 = sphi 0, %s194
      %s196 = sphi 0, %s194
      %s197 = sphi 0, %s196
      %s211 = sphi 0, %s197
      %s215 = sphi 0, %s215
      %s217 = sphi 0, %s215
      %s218 = sphi 0, %s217
      %s232 = sphi 0, %s218
      %s236 = sphi 0, %s236
      %s238 = sphi 0, %s236
      %s239 = sphi 0, %s238
      %s253 = sphi 0, %s239
      %s259 = sphi 0, %s261
      %s262 = sphi 0, %s259
      %s263 = sphi 0, %s262
      %s279 = sphi 0, %s263
    $region4: #{tpu_custom_call.1} parent=1 // loop_header_branch
      %32 = sbr.rel (%p30) target = $region8
    $region5: #{tpu_custom_call.1} parent=1 // loop_body
      %s34 = ssub.s32 %s29, 1
      %s35 = ssub.s32 %s29, 2
      %s36 = sadd.s32 %s29, 1
      %s37 = ssub.s32 %s29, %s36
      %p38 = scmp.eq.s32.totalorder %s37, 0
      %s40 = sadd.s32 %s39, 1
      %s41 = scalar_select %p38, %s39, %s40
      %p44 = pneg %p38
      %p45 = scmp.eq.s32.totalorder %s29, 1
      %p46 = por %p44, %p45
      %p47 = scmp.ne.s32.totalorder %s39, %s42
      %p48 = scmp.eq.s32.totalorder %s29, 0
      %p49 = por %p47, %p48
      %p50 = scmp.ne.s32.totalorder %s39, %s42
      %p51 = scmp.eq.s32.totalorder %s34, 1
      %p52 = por %p50, %p51
      %p53 = scmp.ne.s32.totalorder %s42, %s43
      %p54 = scmp.eq.s32.totalorder %s34, 0
      %p55 = por %p53, %p54
      %p56 = scmp.ne.s32.totalorder %s42, %s43
      %p57 = scmp.eq.s32.totalorder %s35, 1
      %p58 = por %p56, %p57
      %p60 = scmp.ne.s32.totalorder %s43, %s59
      %p61 = scmp.eq.s32.totalorder %s35, 0
      %p62 = por %p60, %p61
      %s63 = ssub.s32 %s29, %s36
      %p64 = scmp.eq.s32.totalorder %s63, 0
      %s66 = sadd.s32 %s65, 1
      %s67 = scalar_select %p64, %s65, %s66
      %p70 = pneg %p64
      %p71 = scmp.eq.s32.totalorder %s29, 1
      %p72 = por %p70, %p71
      %p73 = scmp.ne.s32.totalorder %s65, %s68
      %p74 = scmp.eq.s32.totalorder %s29, 0
      %p75 = por %p73, %p74
      %p76 = scmp.ne.s32.totalorder %s65, %s68
      %p77 = scmp.eq.s32.totalorder %s34, 1
      %p78 = por %p76, %p77
      %p79 = scmp.ne.s32.totalorder %s68, %s69
      %p80 = scmp.eq.s32.totalorder %s34, 0
      %p81 = por %p79, %p80
      %p82 = scmp.ne.s32.totalorder %s68, %s69
      %p83 = scmp.eq.s32.totalorder %s35, 1
      %p84 = por %p82, %p83
      %p86 = scmp.ne.s32.totalorder %s69, %s85
      %p87 = scmp.eq.s32.totalorder %s35, 0
      %p88 = por %p86, %p87
      %s90 = sadd.s32 %s89, 1
      %p93 = scmp.eq.s32.totalorder %s29, 1
      %p94 = scmp.ne.s32.totalorder %s89, %s91
      %p95 = scmp.eq.s32.totalorder %s29, 0
      %p96 = por %p94, %p95
      %p97 = scmp.ne.s32.totalorder %s89, %s91
      %p98 = scmp.eq.s32.totalorder %s34, 1
      %p99 = por %p97, %p98
      %p100 = scmp.ne.s32.totalorder %s91, %s92
      %p101 = scmp.eq.s32.totalorder %s34, 0
      %p102 = por %p100, %p101
      %p103 = scmp.ne.s32.totalorder %s91, %s92
      %p104 = scmp.eq.s32.totalorder %s35, 1
      %p105 = por %p103, %p104
      %p107 = scmp.ne.s32.totalorder %s92, %s106
      %p108 = scmp.eq.s32.totalorder %s35, 0
      %p109 = por %p107, %p108
      %s111 = sadd.s32 %s110, 1
      %p114 = scmp.eq.s32.totalorder %s29, 1
      %p115 = scmp.ne.s32.totalorder %s110, %s112
      %p116 = scmp.eq.s32.totalorder %s29, 0
      %p117 = por %p115, %p116
      %p118 = scmp.ne.s32.totalorder %s110, %s112
      %p119 = scmp.eq.s32.totalorder %s34, 1
      %p120 = por %p118, %p119
      %p121 = scmp.ne.s32.totalorder %s112, %s113
      %p122 = scmp.eq.s32.totalorder %s34, 0
      %p123 = por %p121, %p122
      %p124 = scmp.ne.s32.totalorder %s112, %s113
      %p125 = scmp.eq.s32.totalorder %s35, 1
      %p126 = por %p124, %p125
      %p128 = scmp.ne.s32.totalorder %s113, %s127
      %p129 = scmp.eq.s32.totalorder %s35, 0
      %p130 = por %p128, %p129
      %s132 = sadd.s32 %s131, 1
      %p135 = scmp.eq.s32.totalorder %s29, 1
      %p136 = scmp.ne.s32.totalorder %s131, %s133
      %p137 = scmp.eq.s32.totalorder %s29, 0
      %p138 = por %p136, %p137
      %p139 = scmp.ne.s32.totalorder %s131, %s133
      %p140 = scmp.eq.s32.totalorder %s34, 1
      %p141 = por %p139, %p140
      %p142 = scmp.ne.s32.totalorder %s133, %s134
      %p143 = scmp.eq.s32.totalorder %s34, 0
      %p144 = por %p142, %p143
      %p145 = scmp.ne.s32.totalorder %s133, %s134
      %p146 = scmp.eq.s32.totalorder %s35, 1
      %p147 = por %p145, %p146
      %p149 = scmp.ne.s32.totalorder %s134, %s148
      %p150 = scmp.eq.s32.totalorder %s35, 0
      %p151 = por %p149, %p150
      %s153 = sadd.s32 %s152, 1
      %p156 = scmp.eq.s32.totalorder %s29, 1
      %p157 = scmp.ne.s32.totalorder %s152, %s154
      %p158 = scmp.eq.s32.totalorder %s29, 0
      %p159 = por %p157, %p158
      %p160 = scmp.ne.s32.totalorder %s152, %s154
      %p161 = scmp.eq.s32.totalorder %s34, 1
      %p162 = por %p160, %p161
      %p163 = scmp.ne.s32.totalorder %s154, %s155
      %p164 = scmp.eq.s32.totalorder %s34, 0
      %p165 = por %p163, %p164
      %p166 = scmp.ne.s32.totalorder %s154, %s155
      %p167 = scmp.eq.s32.totalorder %s35, 1
      %p168 = por %p166, %p167
      %p170 = scmp.ne.s32.totalorder %s155, %s169
      %p171 = scmp.eq.s32.totalorder %s35, 0
      %p172 = por %p170, %p171
      %s174 = sadd.s32 %s173, 1
      %p177 = scmp.eq.s32.totalorder %s29, 1
      %p178 = scmp.ne.s32.totalorder %s173, %s175
      %p179 = scmp.eq.s32.totalorder %s29, 0
      %p180 = por %p178, %p179
      %p181 = scmp.ne.s32.totalorder %s173, %s175
      %p182 = scmp.eq.s32.totalorder %s34, 1
      %p183 = por %p181, %p182
      %p184 = scmp.ne.s32.totalorder %s175, %s176
      %p185 = scmp.eq.s32.totalorder %s34, 0
      %p186 = por %p184, %p185
      %p187 = scmp.ne.s32.totalorder %s175, %s176
      %p188 = scmp.eq.s32.totalorder %s35, 1
      %p189 = por %p187, %p188
      %p191 = scmp.ne.s32.totalorder %s176, %s190
      %p192 = scmp.eq.s32.totalorder %s35, 0
      %p193 = por %p191, %p192
      %s195 = sadd.s32 %s194, 1
      %p198 = scmp.eq.s32.totalorder %s29, 1
      %p199 = scmp.ne.s32.totalorder %s194, %s196
      %p200 = scmp.eq.s32.totalorder %s29, 0
      %p201 = por %p199, %p200
      %p202 = scmp.ne.s32.totalorder %s194, %s196
      %p203 = scmp.eq.s32.totalorder %s34, 1
      %p204 = por %p202, %p203
      %p205 = scmp.ne.s32.totalorder %s196, %s197
      %p206 = scmp.eq.s32.totalorder %s34, 0
      %p207 = por %p205, %p206
      %p208 = scmp.ne.s32.totalorder %s196, %s197
      %p209 = scmp.eq.s32.totalorder %s35, 1
      %p210 = por %p208, %p209
      %p212 = scmp.ne.s32.totalorder %s197, %s211
      %p213 = scmp.eq.s32.totalorder %s35, 0
      %p214 = por %p212, %p213
      %s216 = sadd.s32 %s215, 1
      %p219 = scmp.eq.s32.totalorder %s29, 1
      %p220 = scmp.ne.s32.totalorder %s215, %s217
      %p221 = scmp.eq.s32.totalorder %s29, 0
      %p222 = por %p220, %p221
      %p223 = scmp.ne.s32.totalorder %s215, %s217
      %p224 = scmp.eq.s32.totalorder %s34, 1
      %p225 = por %p223, %p224
      %p226 = scmp.ne.s32.totalorder %s217, %s218
      %p227 = scmp.eq.s32.totalorder %s34, 0
      %p228 = por %p226, %p227
      %p229 = scmp.ne.s32.totalorder %s217, %s218
      %p230 = scmp.eq.s32.totalorder %s35, 1
      %p231 = por %p229, %p230
      %p233 = scmp.ne.s32.totalorder %s218, %s232
      %p234 = scmp.eq.s32.totalorder %s35, 0
      %p235 = por %p233, %p234
      %s237 = sadd.s32 %s236, 1
      %p240 = scmp.eq.s32.totalorder %s29, 1
      %p241 = scmp.ne.s32.totalorder %s236, %s238
      %p242 = scmp.eq.s32.totalorder %s29, 0
      %p243 = por %p241, %p242
      %p244 = scmp.ne.s32.totalorder %s236, %s238
      %p245 = scmp.eq.s32.totalorder %s34, 1
      %p246 = por %p244, %p245
      %p247 = scmp.ne.s32.totalorder %s238, %s239
      %p248 = scmp.eq.s32.totalorder %s34, 0
      %p249 = por %p247, %p248
      %p250 = scmp.ne.s32.totalorder %s238, %s239
      %p251 = scmp.eq.s32.totalorder %s35, 1
      %p252 = por %p250, %p251
      %p254 = scmp.ne.s32.totalorder %s239, %s253
      %p255 = scmp.eq.s32.totalorder %s35, 0
      %p256 = por %p254, %p255
      %s257 = ssub.s32 %s29, %s36
      %p258 = scmp.eq.s32.totalorder %s257, 0
      %s260 = sadd.s32 %s259, 1
      %s261 = scalar_select %p258, %s259, %s260
      %p264 = pneg %p258
      %p265 = scmp.eq.s32.totalorder %s29, 1
      %p266 = por %p264, %p265
      %p267 = scmp.ne.s32.totalorder %s259, %s262
      %p268 = scmp.eq.s32.totalorder %s29, 0
      %p269 = por %p267, %p268
      %p270 = scmp.ne.s32.totalorder %s259, %s262
      %p271 = scmp.eq.s32.totalorder %s34, 1
      %p272 = por %p270, %p271
      %p273 = scmp.ne.s32.totalorder %s262, %s263
      %p274 = scmp.eq.s32.totalorder %s34, 0
      %p275 = por %p273, %p274
      %p276 = scmp.ne.s32.totalorder %s262, %s263
      %p277 = scmp.eq.s32.totalorder %s35, 1
      %p278 = por %p276, %p277
      %p280 = scmp.ne.s32.totalorder %s263, %s279
      %p281 = scmp.eq.s32.totalorder %s35, 0
      %p282 = por %p280, %p281
      %p283 = scmp.le.s32.totalorder 1, %s29
      %p284 = scmp.lt.s32.totalorder %s29, 3
      %p285 = pnand %p283, %p284
      %p286 = pneg %p285
      // Predicated region
      $region9: #{tpu_custom_call.1} parent=5 // pred_check
        _
      $region10: #{tpu_custom_call.1} parent=5 // pred_check_branch
        %288 = sbr.rel (%p285) target = $region12
      $region11: #{tpu_custom_call.1} parent=5 // pred_region
        %s289 = ssub.s32 %s29, 1
        // Predicated region
        $region13: #{tpu_custom_call.1} parent=11 // pred_check
          %p290 = pneg %p102
        $region14: #{tpu_custom_call.1} parent=11 // pred_check_branch
          %292 = sbr.rel (%p290) target = $region16
        $region15: #{tpu_custom_call.1} parent=11 // pred_region
          %294 = vsyncadd [#allocation6], 0
          %s295 = sshll.u32 %s2, 4
          %s296 = int_to_ptr.hbm [resolvable:$true] %s295
          %s297 = sshll.u32 [#allocation7], 4
          %s298 = int_to_ptr.vmem [resolvable:$true] %s297
          %303 = dma.hbm_to_vmem [thread:$0]  %s296, 2048, %s298, [#allocation6], 128, 128, 8
        $region16: #{tpu_custom_call.1} parent=11 // pred_fallthru
          _
        // Predicated region
        $region17: #{tpu_custom_call.1} parent=11 // pred_check
          %p304 = pneg %p123
        $region18: #{tpu_custom_call.1} parent=11 // pred_check_branch
          %306 = sbr.rel (%p304) target = $region20
        $region19: #{tpu_custom_call.1} parent=11 // pred_region
          %308 = vsyncadd [#allocation9], 0
          %s309 = sshll.u32 %s3, 4
          %s310 = int_to_ptr.hbm [resolvable:$true] %s309
          %s311 = sshll.u32 [#allocation8], 4
          %s312 = int_to_ptr.vmem [resolvable:$true] %s311
          %317 = dma.hbm_to_vmem [thread:$0]  %s310, 2048, %s312, [#allocation9], 128, 128, 8
        $region20: #{tpu_custom_call.1} parent=11 // pred_fallthru
          _
        // Predicated region
        $region21: #{tpu_custom_call.1} parent=11 // pred_check
          %p318 = pneg %p144
        $region22: #{tpu_custom_call.1} parent=11 // pred_check_branch
          %320 = sbr.rel (%p318) target = $region24
        $region23: #{tpu_custom_call.1} parent=11 // pred_region
          %322 = vsyncadd [#allocation9], 0
          %s323 = sshll.u32 %s4, 4
          %s324 = int_to_ptr.hbm [resolvable:$true] %s323
          %s325 = sshll.u32 [#allocation10], 4
          %s326 = int_to_ptr.vmem [resolvable:$true] %s325
          %331 = dma.hbm_to_vmem [thread:$0]  %s324, 2048, %s326, [#allocation9], 128, 128, 8
        $region24: #{tpu_custom_call.1} parent=11 // pred_fallthru
          _
        // Predicated region
        $region25: #{tpu_custom_call.1} parent=11 // pred_check
          %p332 = pneg %p165
        $region26: #{tpu_custom_call.1} parent=11 // pred_check_branch
          %334 = sbr.rel (%p332) target = $region28
        $region27: #{tpu_custom_call.1} parent=11 // pred_region
          %336 = vsyncadd [#allocation12], 0
          %s337 = sshll.u32 %s5, 4
          %s338 = int_to_ptr.hbm [resolvable:$true] %s337
          %s339 = sshll.u32 [#allocation11], 4
          %s340 = int_to_ptr.vmem [resolvable:$true] %s339
          %345 = dma.hbm_to_vmem [thread:$0]  %s338, 2048, %s340, [#allocation12], 128, 128, 8
        $region28: #{tpu_custom_call.1} parent=11 // pred_fallthru
          _
        // Predicated region
        $region29: #{tpu_custom_call.1} parent=11 // pred_check
          %p346 = pneg %p186
        $region30: #{tpu_custom_call.1} parent=11 // pred_check_branch
          %348 = sbr.rel (%p346) target = $region32
        $region31: #{tpu_custom_call.1} parent=11 // pred_region
          %350 = vsyncadd [#allocation12], 0
          %s351 = sshll.u32 %s6, 4
          %s352 = int_to_ptr.hbm [resolvable:$true] %s351
          %s353 = sshll.u32 [#allocation13], 4
          %s354 = int_to_ptr.vmem [resolvable:$true] %s353
          %359 = dma.hbm_to_vmem [thread:$0]  %s352, 1024, %s354, [#allocation12], 64, 64, 4
        $region32: #{tpu_custom_call.1} parent=11 // pred_fallthru
          _
        // Predicated region
        $region33: #{tpu_custom_call.1} parent=11 // pred_check
          %p360 = pneg %p207
        $region34: #{tpu_custom_call.1} parent=11 // pred_check_branch
          %362 = sbr.rel (%p360) target = $region36
        $region35: #{tpu_custom_call.1} parent=11 // pred_region
          %364 = vsyncadd [#allocation15], 0
          %s365 = sshll.u32 %s7, 4
          %s366 = int_to_ptr.hbm [resolvable:$true] %s365
          %s367 = sshll.u32 [#allocation14], 4
          %s368 = int_to_ptr.vmem [resolvable:$true] %s367
          %373 = dma.hbm_to_vmem [thread:$0]  %s366, 1024, %s368, [#allocation15], 64, 64, 4
        $region36: #{tpu_custom_call.1} parent=11 // pred_fallthru
          _
        // Predicated region
        $region37: #{tpu_custom_call.1} parent=11 // pred_check
          %p374 = pneg %p228
        $region38: #{tpu_custom_call.1} parent=11 // pred_check_branch
          %376 = sbr.rel (%p374) target = $region40
        $region39: #{tpu_custom_call.1} parent=11 // pred_region
          %378 = vsyncadd [#allocation15], 0
          %s379 = sshll.u32 %s8, 4
          %s380 = int_to_ptr.hbm [resolvable:$true] %s379
          %s381 = sshll.u32 [#allocation16], 4
          %s382 = int_to_ptr.vmem [resolvable:$true] %s381
          %387 = dma.hbm_to_vmem [thread:$0]  %s380, 1024, %s382, [#allocation15], 64, 64, 4
        $region40: #{tpu_custom_call.1} parent=11 // pred_fallthru
          _
        // Predicated region
        $region41: #{tpu_custom_call.1} parent=11 // pred_check
          %p388 = pneg %p249
        $region42: #{tpu_custom_call.1} parent=11 // pred_check_branch
          %390 = sbr.rel (%p388) target = $region44
        $region43: #{tpu_custom_call.1} parent=11 // pred_region
          %392 = vsyncadd [#allocation18], 0
          %s393 = sshll.u32 %s9, 4
          %s394 = int_to_ptr.hbm [resolvable:$true] %s393
          %s395 = sshll.u32 [#allocation17], 4
          %s396 = int_to_ptr.vmem [resolvable:$true] %s395
          %401 = dma.hbm_to_vmem [thread:$0]  %s394, 1024, %s396, [#allocation18], 64, 64, 4
        $region44: #{tpu_custom_call.1} parent=11 // pred_fallthru
          _
      $region12: #{tpu_custom_call.1} parent=5 // pred_fallthru
        _
      %p402 = scmp.lt.s32.totalorder %s29, 2
      // Predicated region
      $region45: #{tpu_custom_call.1} parent=5 // pred_check
        %p403 = pneg %p402
      $region46: #{tpu_custom_call.1} parent=5 // pred_check_branch
        %405 = sbr.rel (%p403) target = $region48
      $region47: #{tpu_custom_call.1} parent=5 // pred_region
        // Predicated region
        $region49: #{tpu_custom_call.1} parent=47 // pred_check
          %p406 = pneg %p49
        $region50: #{tpu_custom_call.1} parent=47 // pred_check_branch
          %408 = sbr.rel (%p406) target = $region52
        $region51: #{tpu_custom_call.1} parent=47 // pred_region
          %s409 = sand.u32 %s39, 1
          %s410 = scalar_lea.sflag [#allocation3], %s409
          %s411 = sand.u32 %s39, 1
          %s412 = smul.addr %s411, 384
          %s413 = scalar_lea.vmem [#allocation2], %s412
          %415 = vsyncadd %s410, 0
          %s416 = smul.addr %s29, 48
          %s417 = smul.addr %s416, 8
          %s418 = scalar_lea.hbm %s0, %s417
          %s419 = sshll.u32 %s418, 4
          %s420 = int_to_ptr.hbm [resolvable:$true] %s419
          %s421 = sshll.u32 %s413, 4
          %s422 = int_to_ptr.vmem [resolvable:$true] %s421
          %427 = dma.hbm_to_vmem [thread:$0]  %s420, 6144, %s422, %s410, 128, 128, 8
        $region52: #{tpu_custom_call.1} parent=47 // pred_fallthru
          _
        // Predicated region
        $region53: #{tpu_custom_call.1} parent=47 // pred_check
          %p428 = pneg %p75
        $region54: #{tpu_custom_call.1} parent=47 // pred_check_branch
          %430 = sbr.rel (%p428) target = $region56
        $region55: #{tpu_custom_call.1} parent=47 // pred_region
          %s431 = sand.u32 %s29, 1
          %s432 = scalar_lea.sflag [#allocation6], %s431
          %s433 = sand.u32 %s65, 1
          %s434 = smul.addr %s433, 128
          %s435 = scalar_lea.vmem [#allocation5], %s434
          %437 = vsyncadd %s432, 0
          %s438 = smul.addr %s29, 16
          %s439 = smul.addr %s438, 8
          %s440 = scalar_lea.hbm %s1, %s439
          %s441 = sshll.u32 %s440, 4
          %s442 = int_to_ptr.hbm [resolvable:$true] %s441
          %s443 = sshll.u32 %s435, 4
          %s444 = int_to_ptr.vmem [resolvable:$true] %s443
          %449 = dma.hbm_to_vmem [thread:$0]  %s442, 2048, %s444, %s432, 128, 128, 8
        $region56: #{tpu_custom_call.1} parent=47 // pred_fallthru
          _
      $region48: #{tpu_custom_call.1} parent=5 // pred_fallthru
        _
      %p450 = scmp.le.s32.totalorder 1, %s29
      %p451 = scmp.lt.s32.totalorder %s29, 3
      %p452 = pnand %p450, %p451
      %p453 = pneg %p452
      // Predicated region
      $region57: #{tpu_custom_call.1} parent=5 // pred_check
        _
      $region58: #{tpu_custom_call.1} parent=5 // pred_check_branch
        %455 = sbr.rel (%p452) target = $region60
      $region59: #{tpu_custom_call.1} parent=5 // pred_region
        %s456 = ssub.s32 %s29, 1
        %s457 = sand.u32 %s42, 1
        %s458 = scalar_lea.sflag [#allocation3], %s457
        %s459 = sand.u32 %s42, 1
        %s460 = smul.addr %s459, 384
        %s461 = scalar_lea.vmem [#allocation2], %s460
        // Predicated region
        $region61: #{tpu_custom_call.1} parent=59 // pred_check
          %p462 = pneg %p55
        $region62: #{tpu_custom_call.1} parent=59 // pred_check_branch
          %464 = sbr.rel (%p462) target = $region64
        $region63: #{tpu_custom_call.1} parent=59 // pred_region
          %466 = dma.done %s458, 6144
        $region64: #{tpu_custom_call.1} parent=59 // pred_fallthru
          _
        %s467 = sand.u32 %s34, 1
        %s468 = scalar_lea.sflag [#allocation6], %s467
        %s469 = sand.u32 %s68, 1
        %s470 = smul.addr %s469, 128
        %s471 = scalar_lea.vmem [#allocation5], %s470
        // Predicated region
        $region65: #{tpu_custom_call.1} parent=59 // pred_check
          %p472 = pneg %p81
        $region66: #{tpu_custom_call.1} parent=59 // pred_check_branch
          %474 = sbr.rel (%p472) target = $region68
        $region67: #{tpu_custom_call.1} parent=59 // pred_region
          %476 = dma.done %s468, 2048
        $region68: #{tpu_custom_call.1} parent=59 // pred_fallthru
          _
        // Predicated region
        $region69: #{tpu_custom_call.1} parent=59 // pred_check
          %p477 = pneg %p102
        $region70: #{tpu_custom_call.1} parent=59 // pred_check_branch
          %479 = sbr.rel (%p477) target = $region72
        $region71: #{tpu_custom_call.1} parent=59 // pred_region
          %481 = dma.done [#allocation6], 2048
        $region72: #{tpu_custom_call.1} parent=59 // pred_fallthru
          _
        // Predicated region
        $region73: #{tpu_custom_call.1} parent=59 // pred_check
          %p482 = pneg %p123
        $region74: #{tpu_custom_call.1} parent=59 // pred_check_branch
          %484 = sbr.rel (%p482) target = $region76
        $region75: #{tpu_custom_call.1} parent=59 // pred_region
          %486 = dma.done [#allocation9], 2048
        $region76: #{tpu_custom_call.1} parent=59 // pred_fallthru
          _
        // Predicated region
        $region77: #{tpu_custom_call.1} parent=59 // pred_check
          %p487 = pneg %p144
        $region78: #{tpu_custom_call.1} parent=59 // pred_check_branch
          %489 = sbr.rel (%p487) target = $region80
        $region79: #{tpu_custom_call.1} parent=59 // pred_region
          %491 = dma.done [#allocation9], 2048
        $region80: #{tpu_custom_call.1} parent=59 // pred_fallthru
          _
        // Predicated region
        $region81: #{tpu_custom_call.1} parent=59 // pred_check
          %p492 = pneg %p165
        $region82: #{tpu_custom_call.1} parent=59 // pred_check_branch
          %494 = sbr.rel (%p492) target = $region84
        $region83: #{tpu_custom_call.1} parent=59 // pred_region
          %496 = dma.done [#allocation12], 2048
        $region84: #{tpu_custom_call.1} parent=59 // pred_fallthru
          _
        // Predicated region
        $region85: #{tpu_custom_call.1} parent=59 // pred_check
          %p497 = pneg %p186
        $region86: #{tpu_custom_call.1} parent=59 // pred_check_branch
          %499 = sbr.rel (%p497) target = $region88
        $region87: #{tpu_custom_call.1} parent=59 // pred_region
          %501 = dma.done [#allocation12], 1024
        $region88: #{tpu_custom_call.1} parent=59 // pred_fallthru
          _
        // Predicated region
        $region89: #{tpu_custom_call.1} parent=59 // pred_check
          %p502 = pneg %p207
        $region90: #{tpu_custom_call.1} parent=59 // pred_check_branch
          %504 = sbr.rel (%p502) target = $region92
        $region91: #{tpu_custom_call.1} parent=59 // pred_region
          %506 = dma.done [#allocation15], 1024
        $region92: #{tpu_custom_call.1} parent=59 // pred_fallthru
          _
        // Predicated region
        $region93: #{tpu_custom_call.1} parent=59 // pred_check
          %p507 = pneg %p228
        $region94: #{tpu_custom_call.1} parent=59 // pred_check_branch
          %509 = sbr.rel (%p507) target = $region96
        $region95: #{tpu_custom_call.1} parent=59 // pred_region
          %511 = dma.done [#allocation15], 1024
        $region96: #{tpu_custom_call.1} parent=59 // pred_fallthru
          _
        // Predicated region
        $region97: #{tpu_custom_call.1} parent=59 // pred_check
          %p512 = pneg %p249
        $region98: #{tpu_custom_call.1} parent=59 // pred_check_branch
          %514 = sbr.rel (%p512) target = $region100
        $region99: #{tpu_custom_call.1} parent=59 // pred_region
          %516 = dma.done [#allocation18], 1024
        $region100: #{tpu_custom_call.1} parent=59 // pred_fallthru
          _
        %s517 = sand.u32 %s42, 1
        %s518 = scalar_lea.sflag [#allocation3], %s517
        %s519 = sand.u32 %s42, 1
        %s520 = smul.addr %s519, 384
        %s521 = scalar_lea.vmem [#allocation2], %s520
        %p522 = pneg %p55
        %p523 = pneg %p52
        %s524 = sand.u32 %s34, 1
        %s525 = scalar_lea.sflag [#allocation6], %s524
        %s526 = sand.u32 %s68, 1
        %s527 = smul.addr %s526, 128
        %s528 = scalar_lea.vmem [#allocation5], %s527
        %p529 = pneg %p81
        %p530 = pneg %p78
        %p531 = pneg %p102
        %p532 = pneg %p99
        %p533 = pneg %p123
        %p534 = pneg %p120
        %p535 = pneg %p144
        %p536 = pneg %p141
        %p537 = pneg %p165
        %p538 = pneg %p162
        %p539 = pneg %p186
        %p540 = pneg %p183
        %p541 = pneg %p207
        %p542 = pneg %p204
        %p543 = pneg %p228
        %p544 = pneg %p225
        %p545 = pneg %p249
        %p546 = pneg %p246
        %p547 = pneg %p275
        %p548 = pneg %p272
        %s549 = sand.u32 %s262, 1
        %s550 = scalar_lea.sflag [#allocation4], %s549
        %s551 = sand.u32 %s262, 1
        %s552 = smul.addr %s551, 384
        %s553 = scalar_lea.vmem [#allocation19], %s552
        %v554 = vld [vmem:[%s471] sm:$0xff]
        %v555 = vld [vmem:[%s471 + $0x8] sm:$0xff]
        %v556 = vld [vmem:[%s471 + $0x10] sm:$0xff]
        %v557 = vld [vmem:[%s471 + $0x18] sm:$0xff]
        %v558 = vld [vmem:[%s471 + $0x20] sm:$0xff]
        %v559 = vld [vmem:[%s471 + $0x28] sm:$0xff]
        %v560 = vld [vmem:[%s471 + $0x30] sm:$0xff]
        %v561 = vld [vmem:[%s471 + $0x38] sm:$0xff]
        %v562 = vld [vmem:[%s471 + $0x40] sm:$0xff]
        %v563 = vld [vmem:[%s471 + $0x48] sm:$0xff]
        %v564 = vld [vmem:[%s471 + $0x50] sm:$0xff]
        %v565 = vld [vmem:[%s471 + $0x58] sm:$0xff]
        %v566 = vld [vmem:[%s471 + $0x60] sm:$0xff]
        %v567 = vld [vmem:[%s471 + $0x68] sm:$0xff]
        %v568 = vld [vmem:[%s471 + $0x70] sm:$0xff]
        %v569 = vld [vmem:[%s471 + $0x78] sm:$0xff]
        %v570 = vld [vmem:[#allocation7] sm:$0xff]
        %v571 = vld [vmem:[#allocation7 + $0x8] sm:$0xff]
        %v572 = vld [vmem:[#allocation7 + $0x10] sm:$0xff]
        %v573 = vld [vmem:[#allocation7 + $0x18] sm:$0xff]
        %v574 = vld [vmem:[#allocation7 + $0x20] sm:$0xff]
        %v575 = vld [vmem:[#allocation7 + $0x28] sm:$0xff]
        %v576 = vld [vmem:[#allocation7 + $0x30] sm:$0xff]
        %v577 = vld [vmem:[#allocation7 + $0x38] sm:$0xff]
        %v578 = vld [vmem:[#allocation7 + $0x40] sm:$0xff]
        %v579 = vld [vmem:[#allocation7 + $0x48] sm:$0xff]
        %v580 = vld [vmem:[#allocation7 + $0x50] sm:$0xff]
        %v581 = vld [vmem:[#allocation7 + $0x58] sm:$0xff]
        %v582 = vld [vmem:[#allocation7 + $0x60] sm:$0xff]
        %v583 = vld [vmem:[#allocation7 + $0x68] sm:$0xff]
        %v584 = vld [vmem:[#allocation7 + $0x70] sm:$0xff]
        %v585 = vld [vmem:[#allocation7 + $0x78] sm:$0xff]
        %v586 = vmul.f32 %v554, %v570
        %v587 = vmul.f32 %v555, %v571
        %v588 = vmul.f32 %v556, %v572
        %v589 = vmul.f32 %v557, %v573
        %v590 = vmul.f32 %v558, %v574
        %v591 = vmul.f32 %v559, %v575
        %v592 = vmul.f32 %v560, %v576
        %v593 = vmul.f32 %v561, %v577
        %v594 = vmul.f32 %v562, %v578
        %v595 = vmul.f32 %v563, %v579
        %v596 = vmul.f32 %v564, %v580
        %v597 = vmul.f32 %v565, %v581
        %v598 = vmul.f32 %v566, %v582
        %v599 = vmul.f32 %v567, %v583
        %v600 = vmul.f32 %v568, %v584
        %v601 = vmul.f32 %v569, %v585
        %v602 = vpack.c.bf16 %v587, %v586
        %v603 = vpack.c.bf16 %v589, %v588
        %v604 = vpack.c.bf16 %v591, %v590
        %v605 = vpack.c.bf16 %v593, %v592
        %v606 = vpack.c.bf16 %v595, %v594
        %v607 = vpack.c.bf16 %v597, %v596
        %v608 = vpack.c.bf16 %v599, %v598
        %v609 = vpack.c.bf16 %v601, %v600
        %v610 = vld [vmem:[#allocation14] sm:$0xf]
        %v611 = vld [vmem:[#allocation14 + $0x4] sm:$0xf]
        %v612 = vld [vmem:[#allocation14 + $0x8] sm:$0xf]
        %v613 = vld [vmem:[#allocation14 + $0xc] sm:$0xf]
        %v614 = vld [vmem:[#allocation14 + $0x10] sm:$0xf]
        %v615 = vld [vmem:[#allocation14 + $0x14] sm:$0xf]
        %v616 = vld [vmem:[#allocation14 + $0x18] sm:$0xf]
        %v617 = vld [vmem:[#allocation14 + $0x1c] sm:$0xf]
        %v618 = vld [vmem:[#allocation14 + $0x20] sm:$0xf]
        %v619 = vld [vmem:[#allocation14 + $0x24] sm:$0xf]
        %v620 = vld [vmem:[#allocation14 + $0x28] sm:$0xf]
        %v621 = vld [vmem:[#allocation14 + $0x2c] sm:$0xf]
        %v622 = vld [vmem:[#allocation14 + $0x30] sm:$0xf]
        %v623 = vld [vmem:[#allocation14 + $0x34] sm:$0xf]
        %v624 = vld [vmem:[#allocation14 + $0x38] sm:$0xf]
        %v625 = vld [vmem:[#allocation14 + $0x3c] sm:$0xf]
        %v642 = vunpack.c.l.b16 %v610
        %v643 = vunpack.c.l.b16 %v611
        %v644 = vunpack.c.l.b16 %v612
        %v645 = vunpack.c.l.b16 %v613
        %v646 = vunpack.c.l.b16 %v614
        %v647 = vunpack.c.l.b16 %v615
        %v648 = vunpack.c.l.b16 %v616
        %v649 = vunpack.c.l.b16 %v617
        %v650 = vunpack.c.l.b16 %v618
        %v651 = vunpack.c.l.b16 %v619
        %v652 = vunpack.c.l.b16 %v620
        %v653 = vunpack.c.l.b16 %v621
        %v654 = vunpack.c.l.b16 %v622
        %v655 = vunpack.c.l.b16 %v623
        %v656 = vunpack.c.l.b16 %v624
        %v657 = vunpack.c.l.b16 %v625
        %v658 = vpack.c.b16 %v643, %v642
        %v659 = vpack.c.b16 %v645, %v644
        %v660 = vpack.c.b16 %v647, %v646
        %v661 = vpack.c.b16 %v649, %v648
        %v662 = vpack.c.b16 %v651, %v650
        %v663 = vpack.c.b16 %v653, %v652
        %v664 = vpack.c.b16 %v655, %v654
        %v665 = vpack.c.b16 %v657, %v656
        %674 = vmatpush.bf16.msra.mxu0 %v665
        %675 = vmatpush.bf16.msra.mxu0 %v664
        %676 = vmatpush.bf16.msra.mxu0 %v663
        %677 = vmatpush.bf16.msra.mxu0 %v662
        %678 = vmatpush.bf16.msra.mxu0 %v661
        %679 = vmatpush.bf16.msra.mxu0 %v660
        %680 = vmatpush.bf16.msra.mxu0 %v659
        %681 = vmatpush.bf16.msra.mxu0 %v658
        %682 = vmatmul.bf16.gmra.mxu0 %v602
        %v683 = vpop.f32.mrf.mxu0
        %v684 = vadd.f32 0.0, %v683
        %v685 = vpop.f32.mrf.mxu0
        %v686 = vadd.f32 0.0, %v685
        %687 = vmatmul.bf16.gmra.mxu0 %v603
        %v688 = vpop.f32.mrf.mxu0
        %v689 = vadd.f32 0.0, %v688
        %v690 = vpop.f32.mrf.mxu0
        %v691 = vadd.f32 0.0, %v690
        %692 = vmatmul.bf16.gmra.mxu0 %v604
        %v693 = vpop.f32.mrf.mxu0
        %v694 = vadd.f32 0.0, %v693
        %v695 = vpop.f32.mrf.mxu0
        %v696 = vadd.f32 0.0, %v695
        %697 = vmatmul.bf16.gmra.mxu0 %v605
        %v698 = vpop.f32.mrf.mxu0
        %v699 = vadd.f32 0.0, %v698
        %v700 = vpop.f32.mrf.mxu0
        %v701 = vadd.f32 0.0, %v700
        %702 = vmatmul.bf16.gmra.mxu0 %v606
        %v703 = vpop.f32.mrf.mxu0
        %v704 = vadd.f32 0.0, %v703
        %v705 = vpop.f32.mrf.mxu0
        %v706 = vadd.f32 0.0, %v705
        %707 = vmatmul.bf16.gmra.mxu0 %v607
        %v708 = vpop.f32.mrf.mxu0
        %v709 = vadd.f32 0.0, %v708
        %v710 = vpop.f32.mrf.mxu0
        %v711 = vadd.f32 0.0, %v710
        %712 = vmatmul.bf16.gmra.mxu0 %v608
        %v713 = vpop.f32.mrf.mxu0
        %v714 = vadd.f32 0.0, %v713
        %v715 = vpop.f32.mrf.mxu0
        %v716 = vadd.f32 0.0, %v715
        %717 = vmatmul.bf16.gmra.mxu0 %v609
        %v718 = vpop.f32.mrf.mxu0
        %v719 = vadd.f32 0.0, %v718
        %v720 = vpop.f32.mrf.mxu0
        %v721 = vadd.f32 0.0, %v720
        %722 = vdwg.mxu0
        %v723 = vld [vmem:[#allocation13] sm:$0xf]
        %v724 = vld [vmem:[#allocation13 + $0x4] sm:$0xf]
        %v725 = vld [vmem:[#allocation13 + $0x8] sm:$0xf]
        %v726 = vld [vmem:[#allocation13 + $0xc] sm:$0xf]
        %v727 = vld [vmem:[#allocation13 + $0x10] sm:$0xf]
        %v728 = vld [vmem:[#allocation13 + $0x14] sm:$0xf]
        %v729 = vld [vmem:[#allocation13 + $0x18] sm:$0xf]
        %v730 = vld [vmem:[#allocation13 + $0x1c] sm:$0xf]
        %v731 = vld [vmem:[#allocation13 + $0x20] sm:$0xf]
        %v732 = vld [vmem:[#allocation13 + $0x24] sm:$0xf]
        %v733 = vld [vmem:[#allocation13 + $0x28] sm:$0xf]
        %v734 = vld [vmem:[#allocation13 + $0x2c] sm:$0xf]
        %v735 = vld [vmem:[#allocation13 + $0x30] sm:$0xf]
        %v736 = vld [vmem:[#allocation13 + $0x34] sm:$0xf]
        %v737 = vld [vmem:[#allocation13 + $0x38] sm:$0xf]
        %v738 = vld [vmem:[#allocation13 + $0x3c] sm:$0xf]
        %v739 = vpack.c.bf16 %v686, %v684
        %v740 = vpack.c.bf16 %v691, %v689
        %v741 = vpack.c.bf16 %v696, %v694
        %v742 = vpack.c.bf16 %v701, %v699
        %v743 = vpack.c.bf16 %v706, %v704
        %v744 = vpack.c.bf16 %v711, %v709
        %v745 = vpack.c.bf16 %v716, %v714
        %v746 = vpack.c.bf16 %v721, %v719
        %v763 = vunpack.c.l.b16 %v723
        %v764 = vunpack.c.l.b16 %v724
        %v765 = vunpack.c.l.b16 %v725
        %v766 = vunpack.c.l.b16 %v726
        %v767 = vunpack.c.l.b16 %v727
        %v768 = vunpack.c.l.b16 %v728
        %v769 = vunpack.c.l.b16 %v729
        %v770 = vunpack.c.l.b16 %v730
        %v771 = vunpack.c.l.b16 %v731
        %v772 = vunpack.c.l.b16 %v732
        %v773 = vunpack.c.l.b16 %v733
        %v774 = vunpack.c.l.b16 %v734
        %v775 = vunpack.c.l.b16 %v735
        %v776 = vunpack.c.l.b16 %v736
        %v777 = vunpack.c.l.b16 %v737
        %v778 = vunpack.c.l.b16 %v738
        %v779 = vpack.c.b16 %v764, %v763
        %v780 = vpack.c.b16 %v766, %v765
        %v781 = vpack.c.b16 %v768, %v767
        %v782 = vpack.c.b16 %v770, %v769
        %v783 = vpack.c.b16 %v772, %v771
        %v784 = vpack.c.b16 %v774, %v773
        %v785 = vpack.c.b16 %v776, %v775
        %v786 = vpack.c.b16 %v778, %v777
        %795 = vmatpush.bf16.msra.mxu0 %v746
        %796 = vmatpush.bf16.msra.mxu0 %v745
        %797 = vmatpush.bf16.msra.mxu0 %v744
        %798 = vmatpush.bf16.msra.mxu0 %v743
        %799 = vmatpush.bf16.msra.mxu0 %v742
        %800 = vmatpush.bf16.msra.mxu0 %v741
        %801 = vmatpush.bf16.msra.mxu0 %v740
        %802 = vmatpush.bf16.msra.mxu0 %v739
        %803 = vmatmul.bf16.gmra.mxu0 %v779
        %v804 = vpop.f32.mrf.mxu0
        %v805 = vadd.f32 0.0, %v804
        %v806 = vpop.f32.mrf.mxu0
        %v807 = vadd.f32 0.0, %v806
        %808 = vmatmul.bf16.gmra.mxu0 %v780
        %v809 = vpop.f32.mrf.mxu0
        %v810 = vadd.f32 0.0, %v809
        %v811 = vpop.f32.mrf.mxu0
        %v812 = vadd.f32 0.0, %v811
        %813 = vmatmul.bf16.gmra.mxu0 %v781
        %v814 = vpop.f32.mrf.mxu0
        %v815 = vadd.f32 0.0, %v814
        %v816 = vpop.f32.mrf.mxu0
        %v817 = vadd.f32 0.0, %v816
        %818 = vmatmul.bf16.gmra.mxu0 %v782
        %v819 = vpop.f32.mrf.mxu0
        %v820 = vadd.f32 0.0, %v819
        %v821 = vpop.f32.mrf.mxu0
        %v822 = vadd.f32 0.0, %v821
        %823 = vmatmul.bf16.gmra.mxu0 %v783
        %v824 = vpop.f32.mrf.mxu0
        %v825 = vadd.f32 0.0, %v824
        %v826 = vpop.f32.mrf.mxu0
        %v827 = vadd.f32 0.0, %v826
        %828 = vmatmul.bf16.gmra.mxu0 %v784
        %v829 = vpop.f32.mrf.mxu0
        %v830 = vadd.f32 0.0, %v829
        %v831 = vpop.f32.mrf.mxu0
        %v832 = vadd.f32 0.0, %v831
        %833 = vmatmul.bf16.gmra.mxu0 %v785
        %v834 = vpop.f32.mrf.mxu0
        %v835 = vadd.f32 0.0, %v834
        %v836 = vpop.f32.mrf.mxu0
        %v837 = vadd.f32 0.0, %v836
        %838 = vmatmul.bf16.gmra.mxu0 %v786
        %v839 = vpop.f32.mrf.mxu0
        %v840 = vadd.f32 0.0, %v839
        %v841 = vpop.f32.mrf.mxu0
        %v842 = vadd.f32 0.0, %v841
        %843 = vdwg.mxu0
        %v844 = vsub.f32 1.0, %v805
        %v845 = vsub.f32 1.0, %v807
        %v846 = vsub.f32 1.0, %v810
        %v847 = vsub.f32 1.0, %v812
        %v848 = vsub.f32 1.0, %v815
        %v849 = vsub.f32 1.0, %v817
        %v850 = vsub.f32 1.0, %v820
        %v851 = vsub.f32 1.0, %v822
        %v852 = vsub.f32 1.0, %v825
        %v853 = vsub.f32 1.0, %v827
        %v854 = vsub.f32 1.0, %v830
        %v855 = vsub.f32 1.0, %v832
        %v856 = vsub.f32 1.0, %v835
        %v857 = vsub.f32 1.0, %v837
        %v858 = vsub.f32 1.0, %v840
        %v859 = vsub.f32 1.0, %v842
        %v860 = vld [vmem:[#allocation8] sm:$0xff]
        %v861 = vld [vmem:[#allocation8 + $0x8] sm:$0xff]
        %v862 = vld [vmem:[#allocation8 + $0x10] sm:$0xff]
        %v863 = vld [vmem:[#allocation8 + $0x18] sm:$0xff]
        %v864 = vld [vmem:[#allocation8 + $0x20] sm:$0xff]
        %v865 = vld [vmem:[#allocation8 + $0x28] sm:$0xff]
        %v866 = vld [vmem:[#allocation8 + $0x30] sm:$0xff]
        %v867 = vld [vmem:[#allocation8 + $0x38] sm:$0xff]
        %v868 = vld [vmem:[#allocation8 + $0x40] sm:$0xff]
        %v869 = vld [vmem:[#allocation8 + $0x48] sm:$0xff]
        %v870 = vld [vmem:[#allocation8 + $0x50] sm:$0xff]
        %v871 = vld [vmem:[#allocation8 + $0x58] sm:$0xff]
        %v872 = vld [vmem:[#allocation8 + $0x60] sm:$0xff]
        %v873 = vld [vmem:[#allocation8 + $0x68] sm:$0xff]
        %v874 = vld [vmem:[#allocation8 + $0x70] sm:$0xff]
        %v875 = vld [vmem:[#allocation8 + $0x78] sm:$0xff]
        %v876 = vld [vmem:[#allocation10] sm:$0xff]
        %v877 = vld [vmem:[#allocation10 + $0x8] sm:$0xff]
        %v878 = vld [vmem:[#allocation10 + $0x10] sm:$0xff]
        %v879 = vld [vmem:[#allocation10 + $0x18] sm:$0xff]
        %v880 = vld [vmem:[#allocation10 + $0x20] sm:$0xff]
        %v881 = vld [vmem:[#allocation10 + $0x28] sm:$0xff]
        %v882 = vld [vmem:[#allocation10 + $0x30] sm:$0xff]
        %v883 = vld [vmem:[#allocation10 + $0x38] sm:$0xff]
        %v884 = vld [vmem:[#allocation10 + $0x40] sm:$0xff]
        %v885 = vld [vmem:[#allocation10 + $0x48] sm:$0xff]
        %v886 = vld [vmem:[#allocation10 + $0x50] sm:$0xff]
        %v887 = vld [vmem:[#allocation10 + $0x58] sm:$0xff]
        %v888 = vld [vmem:[#allocation10 + $0x60] sm:$0xff]
        %v889 = vld [vmem:[#allocation10 + $0x68] sm:$0xff]
        %v890 = vld [vmem:[#allocation10 + $0x70] sm:$0xff]
        %v891 = vld [vmem:[#allocation10 + $0x78] sm:$0xff]
        %v892 = vld [vmem:[#allocation11] sm:$0xff]
        %v893 = vld [vmem:[#allocation11 + $0x8] sm:$0xff]
        %v894 = vld [vmem:[#allocation11 + $0x10] sm:$0xff]
        %v895 = vld [vmem:[#allocation11 + $0x18] sm:$0xff]
        %v896 = vld [vmem:[#allocation11 + $0x20] sm:$0xff]
        %v897 = vld [vmem:[#allocation11 + $0x28] sm:$0xff]
        %v898 = vld [vmem:[#allocation11 + $0x30] sm:$0xff]
        %v899 = vld [vmem:[#allocation11 + $0x38] sm:$0xff]
        %v900 = vld [vmem:[#allocation11 + $0x40] sm:$0xff]
        %v901 = vld [vmem:[#allocation11 + $0x48] sm:$0xff]
        %v902 = vld [vmem:[#allocation11 + $0x50] sm:$0xff]
        %v903 = vld [vmem:[#allocation11 + $0x58] sm:$0xff]
        %v904 = vld [vmem:[#allocation11 + $0x60] sm:$0xff]
        %v905 = vld [vmem:[#allocation11 + $0x68] sm:$0xff]
        %v906 = vld [vmem:[#allocation11 + $0x70] sm:$0xff]
        %v907 = vld [vmem:[#allocation11 + $0x78] sm:$0xff]
        %v908 = vsub.f32 1.0, %v892
        %v909 = vsub.f32 1.0, %v893
        %v910 = vsub.f32 1.0, %v894
        %v911 = vsub.f32 1.0, %v895
        %v912 = vsub.f32 1.0, %v896
        %v913 = vsub.f32 1.0, %v897
        %v914 = vsub.f32 1.0, %v898
        %v915 = vsub.f32 1.0, %v899
        %v916 = vsub.f32 1.0, %v900
        %v917 = vsub.f32 1.0, %v901
        %v918 = vsub.f32 1.0, %v902
        %v919 = vsub.f32 1.0, %v903
        %v920 = vsub.f32 1.0, %v904
        %v921 = vsub.f32 1.0, %v905
        %v922 = vsub.f32 1.0, %v906
        %v923 = vsub.f32 1.0, %v907
        %v924 = vadd.f32 %v892, 1.0
        %v925 = vadd.f32 %v893, 1.0
        %v926 = vadd.f32 %v894, 1.0
        %v927 = vadd.f32 %v895, 1.0
        %v928 = vadd.f32 %v896, 1.0
        %v929 = vadd.f32 %v897, 1.0
        %v930 = vadd.f32 %v898, 1.0
        %v931 = vadd.f32 %v899, 1.0
        %v932 = vadd.f32 %v900, 1.0
        %v933 = vadd.f32 %v901, 1.0
        %v934 = vadd.f32 %v902, 1.0
        %v935 = vadd.f32 %v903, 1.0
        %v936 = vadd.f32 %v904, 1.0
        %v937 = vadd.f32 %v905, 1.0
        %v938 = vadd.f32 %v906, 1.0
        %v939 = vadd.f32 %v907, 1.0
        %v940 = vld [vmem:[%s461] sm:$0xff]
        %v941 = vld [vmem:[%s461 + $0x8] sm:$0xff]
        %v942 = vld [vmem:[%s461 + $0x10] sm:$0xff]
        %v943 = vld [vmem:[%s461 + $0x18] sm:$0xff]
        %v944 = vld [vmem:[%s461 + $0x20] sm:$0xff]
        %v945 = vld [vmem:[%s461 + $0x28] sm:$0xff]
        %v946 = vld [vmem:[%s461 + $0x30] sm:$0xff]
        %v947 = vld [vmem:[%s461 + $0x38] sm:$0xff]
        %v948 = vld [vmem:[%s461 + $0x40] sm:$0xff]
        %v949 = vld [vmem:[%s461 + $0x48] sm:$0xff]
        %v950 = vld [vmem:[%s461 + $0x50] sm:$0xff]
        %v951 = vld [vmem:[%s461 + $0x58] sm:$0xff]
        %v952 = vld [vmem:[%s461 + $0x60] sm:$0xff]
        %v953 = vld [vmem:[%s461 + $0x68] sm:$0xff]
        %v954 = vld [vmem:[%s461 + $0x70] sm:$0xff]
        %v955 = vld [vmem:[%s461 + $0x78] sm:$0xff]
        %v956 = vmul.f32 %v940, %v844
        %v957 = vmul.f32 %v941, %v845
        %v958 = vmul.f32 %v942, %v846
        %v959 = vmul.f32 %v943, %v847
        %v960 = vmul.f32 %v944, %v848
        %v961 = vmul.f32 %v945, %v849
        %v962 = vmul.f32 %v946, %v850
        %v963 = vmul.f32 %v947, %v851
        %v964 = vmul.f32 %v948, %v852
        %v965 = vmul.f32 %v949, %v853
        %v966 = vmul.f32 %v950, %v854
        %v967 = vmul.f32 %v951, %v855
        %v968 = vmul.f32 %v952, %v856
        %v969 = vmul.f32 %v953, %v857
        %v970 = vmul.f32 %v954, %v858
        %v971 = vmul.f32 %v955, %v859
        %v972 = vadd.f32 %v956, %v805
        %v973 = vadd.f32 %v957, %v807
        %v974 = vadd.f32 %v958, %v810
        %v975 = vadd.f32 %v959, %v812
        %v976 = vadd.f32 %v960, %v815
        %v977 = vadd.f32 %v961, %v817
        %v978 = vadd.f32 %v962, %v820
        %v979 = vadd.f32 %v963, %v822
        %v980 = vadd.f32 %v964, %v825
        %v981 = vadd.f32 %v965, %v827
        %v982 = vadd.f32 %v966, %v830
        %v983 = vadd.f32 %v967, %v832
        %v984 = vadd.f32 %v968, %v835
        %v985 = vadd.f32 %v969, %v837
        %v986 = vadd.f32 %v970, %v840
        %v987 = vadd.f32 %v971, %v842
        %v988 = vadd.f32 %v860, 1.0
        %v989 = vadd.f32 %v861, 1.0
        %v990 = vadd.f32 %v862, 1.0
        %v991 = vadd.f32 %v863, 1.0
        %v992 = vadd.f32 %v864, 1.0
        %v993 = vadd.f32 %v865, 1.0
        %v994 = vadd.f32 %v866, 1.0
        %v995 = vadd.f32 %v867, 1.0
        %v996 = vadd.f32 %v868, 1.0
        %v997 = vadd.f32 %v869, 1.0
        %v998 = vadd.f32 %v870, 1.0
        %v999 = vadd.f32 %v871, 1.0
        %v1000 = vadd.f32 %v872, 1.0
        %v1001 = vadd.f32 %v873, 1.0
        %v1002 = vadd.f32 %v874, 1.0
        %v1003 = vadd.f32 %v875, 1.0
        %v1004 = vmul.f32 %v972, %v988
        %v1005 = vmul.f32 %v973, %v989
        %v1006 = vmul.f32 %v974, %v990
        %v1007 = vmul.f32 %v975, %v991
        %v1008 = vmul.f32 %v976, %v992
        %v1009 = vmul.f32 %v977, %v993
        %v1010 = vmul.f32 %v978, %v994
        %v1011 = vmul.f32 %v979, %v995
        %v1012 = vmul.f32 %v980, %v996
        %v1013 = vmul.f32 %v981, %v997
        %v1014 = vmul.f32 %v982, %v998
        %v1015 = vmul.f32 %v983, %v999
        %v1016 = vmul.f32 %v984, %v1000
        %v1017 = vmul.f32 %v985, %v1001
        %v1018 = vmul.f32 %v986, %v1002
        %v1019 = vmul.f32 %v987, %v1003
        %v1020 = vmax.f32 %v1004, 0.0
        %v1021 = vmax.f32 %v1005, 0.0
        %v1022 = vmax.f32 %v1006, 0.0
        %v1023 = vmax.f32 %v1007, 0.0
        %v1024 = vmax.f32 %v1008, 0.0
        %v1025 = vmax.f32 %v1009, 0.0
        %v1026 = vmax.f32 %v1010, 0.0
        %v1027 = vmax.f32 %v1011, 0.0
        %v1028 = vmax.f32 %v1012, 0.0
        %v1029 = vmax.f32 %v1013, 0.0
        %v1030 = vmax.f32 %v1014, 0.0
        %v1031 = vmax.f32 %v1015, 0.0
        %v1032 = vmax.f32 %v1016, 0.0
        %v1033 = vmax.f32 %v1017, 0.0
        %v1034 = vmax.f32 %v1018, 0.0
        %v1035 = vmax.f32 %v1019, 0.0
        %v1036 = vmin.f32 %v1020, 1.0
        %v1037 = vmin.f32 %v1021, 1.0
        %v1038 = vmin.f32 %v1022, 1.0
        %v1039 = vmin.f32 %v1023, 1.0
        %v1040 = vmin.f32 %v1024, 1.0
        %v1041 = vmin.f32 %v1025, 1.0
        %v1042 = vmin.f32 %v1026, 1.0
        %v1043 = vmin.f32 %v1027, 1.0
        %v1044 = vmin.f32 %v1028, 1.0
        %v1045 = vmin.f32 %v1029, 1.0
        %v1046 = vmin.f32 %v1030, 1.0
        %v1047 = vmin.f32 %v1031, 1.0
        %v1048 = vmin.f32 %v1032, 1.0
        %v1049 = vmin.f32 %v1033, 1.0
        %v1050 = vmin.f32 %v1034, 1.0
        %v1051 = vmin.f32 %v1035, 1.0
        %v1052 = vmul.f32 %v1036, %v876
        %v1053 = vmul.f32 %v1037, %v877
        %v1054 = vmul.f32 %v1038, %v878
        %v1055 = vmul.f32 %v1039, %v879
        %v1056 = vmul.f32 %v1040, %v880
        %v1057 = vmul.f32 %v1041, %v881
        %v1058 = vmul.f32 %v1042, %v882
        %v1059 = vmul.f32 %v1043, %v883
        %v1060 = vmul.f32 %v1044, %v884
        %v1061 = vmul.f32 %v1045, %v885
        %v1062 = vmul.f32 %v1046, %v886
        %v1063 = vmul.f32 %v1047, %v887
        %v1064 = vmul.f32 %v1048, %v888
        %v1065 = vmul.f32 %v1049, %v889
        %v1066 = vmul.f32 %v1050, %v890
        %v1067 = vmul.f32 %v1051, %v891
        %v1068 = vmul.f32 %v1052, %v908
        %v1069 = vmul.f32 %v1053, %v909
        %v1070 = vmul.f32 %v1054, %v910
        %v1071 = vmul.f32 %v1055, %v911
        %v1072 = vmul.f32 %v1056, %v912
        %v1073 = vmul.f32 %v1057, %v913
        %v1074 = vmul.f32 %v1058, %v914
        %v1075 = vmul.f32 %v1059, %v915
        %v1076 = vmul.f32 %v1060, %v916
        %v1077 = vmul.f32 %v1061, %v917
        %v1078 = vmul.f32 %v1062, %v918
        %v1079 = vmul.f32 %v1063, %v919
        %v1080 = vmul.f32 %v1064, %v920
        %v1081 = vmul.f32 %v1065, %v921
        %v1082 = vmul.f32 %v1066, %v922
        %v1083 = vmul.f32 %v1067, %v923
        %v1084 = vmul.f32 %v1052, 1.05
        %v1085 = vmul.f32 %v1053, 1.05
        %v1086 = vmul.f32 %v1054, 1.05
        %v1087 = vmul.f32 %v1055, 1.05
        %v1088 = vmul.f32 %v1056, 1.05
        %v1089 = vmul.f32 %v1057, 1.05
        %v1090 = vmul.f32 %v1058, 1.05
        %v1091 = vmul.f32 %v1059, 1.05
        %v1092 = vmul.f32 %v1060, 1.05
        %v1093 = vmul.f32 %v1061, 1.05
        %v1094 = vmul.f32 %v1062, 1.05
        %v1095 = vmul.f32 %v1063, 1.05
        %v1096 = vmul.f32 %v1064, 1.05
        %v1097 = vmul.f32 %v1065, 1.05
        %v1098 = vmul.f32 %v1066, 1.05
        %v1099 = vmul.f32 %v1067, 1.05
        %v1100 = vmul.f32 %v1084, %v924
        %v1101 = vmul.f32 %v1085, %v925
        %v1102 = vmul.f32 %v1086, %v926
        %v1103 = vmul.f32 %v1087, %v927
        %v1104 = vmul.f32 %v1088, %v928
        %v1105 = vmul.f32 %v1089, %v929
        %v1106 = vmul.f32 %v1090, %v930
        %v1107 = vmul.f32 %v1091, %v931
        %v1108 = vmul.f32 %v1092, %v932
        %v1109 = vmul.f32 %v1093, %v933
        %v1110 = vmul.f32 %v1094, %v934
        %v1111 = vmul.f32 %v1095, %v935
        %v1112 = vmul.f32 %v1096, %v936
        %v1113 = vmul.f32 %v1097, %v937
        %v1114 = vmul.f32 %v1098, %v938
        %v1115 = vmul.f32 %v1099, %v939
        %v1116 = vmin.f32 %v1100, 1.0
        %v1117 = vmin.f32 %v1101, 1.0
        %v1118 = vmin.f32 %v1102, 1.0
        %v1119 = vmin.f32 %v1103, 1.0
        %v1120 = vmin.f32 %v1104, 1.0
        %v1121 = vmin.f32 %v1105, 1.0
        %v1122 = vmin.f32 %v1106, 1.0
        %v1123 = vmin.f32 %v1107, 1.0
        %v1124 = vmin.f32 %v1108, 1.0
        %v1125 = vmin.f32 %v1109, 1.0
        %v1126 = vmin.f32 %v1110, 1.0
        %v1127 = vmin.f32 %v1111, 1.0
        %v1128 = vmin.f32 %v1112, 1.0
        %v1129 = vmin.f32 %v1113, 1.0
        %v1130 = vmin.f32 %v1114, 1.0
        %v1131 = vmin.f32 %v1115, 1.0
        %v1132 = vadd.f32 %v1068, %v1116
        %v1133 = vadd.f32 %v1069, %v1117
        %v1134 = vadd.f32 %v1070, %v1118
        %v1135 = vadd.f32 %v1071, %v1119
        %v1136 = vadd.f32 %v1072, %v1120
        %v1137 = vadd.f32 %v1073, %v1121
        %v1138 = vadd.f32 %v1074, %v1122
        %v1139 = vadd.f32 %v1075, %v1123
        %v1140 = vadd.f32 %v1076, %v1124
        %v1141 = vadd.f32 %v1077, %v1125
        %v1142 = vadd.f32 %v1078, %v1126
        %v1143 = vadd.f32 %v1079, %v1127
        %v1144 = vadd.f32 %v1080, %v1128
        %v1145 = vadd.f32 %v1081, %v1129
        %v1146 = vadd.f32 %v1082, %v1130
        %v1147 = vadd.f32 %v1083, %v1131
        %1148 = vst [vmem:[%s553] sm:$0xff] %v1132
        %1149 = vst [vmem:[%s553 + $0x8] sm:$0xff] %v1133
        %1150 = vst [vmem:[%s553 + $0x10] sm:$0xff] %v1134
        %1151 = vst [vmem:[%s553 + $0x18] sm:$0xff] %v1135
        %1152 = vst [vmem:[%s553 + $0x20] sm:$0xff] %v1136
        %1153 = vst [vmem:[%s553 + $0x28] sm:$0xff] %v1137
        %1154 = vst [vmem:[%s553 + $0x30] sm:$0xff] %v1138
        %1155 = vst [vmem:[%s553 + $0x38] sm:$0xff] %v1139
        %1156 = vst [vmem:[%s553 + $0x40] sm:$0xff] %v1140
        %1157 = vst [vmem:[%s553 + $0x48] sm:$0xff] %v1141
        %1158 = vst [vmem:[%s553 + $0x50] sm:$0xff] %v1142
        %1159 = vst [vmem:[%s553 + $0x58] sm:$0xff] %v1143
        %1160 = vst [vmem:[%s553 + $0x60] sm:$0xff] %v1144
        %1161 = vst [vmem:[%s553 + $0x68] sm:$0xff] %v1145
        %1162 = vst [vmem:[%s553 + $0x70] sm:$0xff] %v1146
        %1163 = vst [vmem:[%s553 + $0x78] sm:$0xff] %v1147
        %s1164 = scalar_lea.vmem %s461, 128 [#allocation2]
        %v1165 = vld [vmem:[%s1164] sm:$0xff]
        %v1166 = vld [vmem:[%s1164 + $0x8] sm:$0xff]
        %v1167 = vld [vmem:[%s1164 + $0x10] sm:$0xff]
        %v1168 = vld [vmem:[%s1164 + $0x18] sm:$0xff]
        %v1169 = vld [vmem:[%s1164 + $0x20] sm:$0xff]
        %v1170 = vld [vmem:[%s1164 + $0x28] sm:$0xff]
        %v1171 = vld [vmem:[%s1164 + $0x30] sm:$0xff]
        %v1172 = vld [vmem:[%s1164 + $0x38] sm:$0xff]
        %v1173 = vld [vmem:[%s1164 + $0x40] sm:$0xff]
        %v1174 = vld [vmem:[%s1164 + $0x48] sm:$0xff]
        %v1175 = vld [vmem:[%s1164 + $0x50] sm:$0xff]
        %v1176 = vld [vmem:[%s1164 + $0x58] sm:$0xff]
        %v1177 = vld [vmem:[%s1164 + $0x60] sm:$0xff]
        %v1178 = vld [vmem:[%s1164 + $0x68] sm:$0xff]
        %v1179 = vld [vmem:[%s1164 + $0x70] sm:$0xff]
        %v1180 = vld [vmem:[%s1164 + $0x78] sm:$0xff]
        %v1181 = vmul.f32 %v1165, %v844
        %v1182 = vmul.f32 %v1166, %v845
        %v1183 = vmul.f32 %v1167, %v846
        %v1184 = vmul.f32 %v1168, %v847
        %v1185 = vmul.f32 %v1169, %v848
        %v1186 = vmul.f32 %v1170, %v849
        %v1187 = vmul.f32 %v1171, %v850
        %v1188 = vmul.f32 %v1172, %v851
        %v1189 = vmul.f32 %v1173, %v852
        %v1190 = vmul.f32 %v1174, %v853
        %v1191 = vmul.f32 %v1175, %v854
        %v1192 = vmul.f32 %v1176, %v855
        %v1193 = vmul.f32 %v1177, %v856
        %v1194 = vmul.f32 %v1178, %v857
        %v1195 = vmul.f32 %v1179, %v858
        %v1196 = vmul.f32 %v1180, %v859
        %v1197 = vadd.f32 %v1181, %v805
        %v1198 = vadd.f32 %v1182, %v807
        %v1199 = vadd.f32 %v1183, %v810
        %v1200 = vadd.f32 %v1184, %v812
        %v1201 = vadd.f32 %v1185, %v815
        %v1202 = vadd.f32 %v1186, %v817
        %v1203 = vadd.f32 %v1187, %v820
        %v1204 = vadd.f32 %v1188, %v822
        %v1205 = vadd.f32 %v1189, %v825
        %v1206 = vadd.f32 %v1190, %v827
        %v1207 = vadd.f32 %v1191, %v830
        %v1208 = vadd.f32 %v1192, %v832
        %v1209 = vadd.f32 %v1193, %v835
        %v1210 = vadd.f32 %v1194, %v837
        %v1211 = vadd.f32 %v1195, %v840
        %v1212 = vadd.f32 %v1196, %v842
        %v1213 = vmul.f32 %v860, 0.3
        %v1214 = vmul.f32 %v861, 0.3
        %v1215 = vmul.f32 %v862, 0.3
        %v1216 = vmul.f32 %v863, 0.3
        %v1217 = vmul.f32 %v864, 0.3
        %v1218 = vmul.f32 %v865, 0.3
        %v1219 = vmul.f32 %v866, 0.3
        %v1220 = vmul.f32 %v867, 0.3
        %v1221 = vmul.f32 %v868, 0.3
        %v1222 = vmul.f32 %v869, 0.3
        %v1223 = vmul.f32 %v870, 0.3
        %v1224 = vmul.f32 %v871, 0.3
        %v1225 = vmul.f32 %v872, 0.3
        %v1226 = vmul.f32 %v873, 0.3
        %v1227 = vmul.f32 %v874, 0.3
        %v1228 = vmul.f32 %v875, 0.3
        %v1229 = vadd.f32 %v1213, 1.0
        %v1230 = vadd.f32 %v1214, 1.0
        %v1231 = vadd.f32 %v1215, 1.0
        %v1232 = vadd.f32 %v1216, 1.0
        %v1233 = vadd.f32 %v1217, 1.0
        %v1234 = vadd.f32 %v1218, 1.0
        %v1235 = vadd.f32 %v1219, 1.0
        %v1236 = vadd.f32 %v1220, 1.0
        %v1237 = vadd.f32 %v1221, 1.0
        %v1238 = vadd.f32 %v1222, 1.0
        %v1239 = vadd.f32 %v1223, 1.0
        %v1240 = vadd.f32 %v1224, 1.0
        %v1241 = vadd.f32 %v1225, 1.0
        %v1242 = vadd.f32 %v1226, 1.0
        %v1243 = vadd.f32 %v1227, 1.0
        %v1244 = vadd.f32 %v1228, 1.0
        %v1245 = vmul.f32 %v1197, %v1229
        %v1246 = vmul.f32 %v1198, %v1230
        %v1247 = vmul.f32 %v1199, %v1231
        %v1248 = vmul.f32 %v1200, %v1232
        %v1249 = vmul.f32 %v1201, %v1233
        %v1250 = vmul.f32 %v1202, %v1234
        %v1251 = vmul.f32 %v1203, %v1235
        %v1252 = vmul.f32 %v1204, %v1236
        %v1253 = vmul.f32 %v1205, %v1237
        %v1254 = vmul.f32 %v1206, %v1238
        %v1255 = vmul.f32 %v1207, %v1239
        %v1256 = vmul.f32 %v1208, %v1240
        %v1257 = vmul.f32 %v1209, %v1241
        %v1258 = vmul.f32 %v1210, %v1242
        %v1259 = vmul.f32 %v1211, %v1243
        %v1260 = vmul.f32 %v1212, %v1244
        %v1261 = vmax.f32 %v1245, 0.0
        %v1262 = vmax.f32 %v1246, 0.0
        %v1263 = vmax.f32 %v1247, 0.0
        %v1264 = vmax.f32 %v1248, 0.0
        %v1265 = vmax.f32 %v1249, 0.0
        %v1266 = vmax.f32 %v1250, 0.0
        %v1267 = vmax.f32 %v1251, 0.0
        %v1268 = vmax.f32 %v1252, 0.0
        %v1269 = vmax.f32 %v1253, 0.0
        %v1270 = vmax.f32 %v1254, 0.0
        %v1271 = vmax.f32 %v1255, 0.0
        %v1272 = vmax.f32 %v1256, 0.0
        %v1273 = vmax.f32 %v1257, 0.0
        %v1274 = vmax.f32 %v1258, 0.0
        %v1275 = vmax.f32 %v1259, 0.0
        %v1276 = vmax.f32 %v1260, 0.0
        %v1277 = vmin.f32 %v1261, 1.0
        %v1278 = vmin.f32 %v1262, 1.0
        %v1279 = vmin.f32 %v1263, 1.0
        %v1280 = vmin.f32 %v1264, 1.0
        %v1281 = vmin.f32 %v1265, 1.0
        %v1282 = vmin.f32 %v1266, 1.0
        %v1283 = vmin.f32 %v1267, 1.0
        %v1284 = vmin.f32 %v1268, 1.0
        %v1285 = vmin.f32 %v1269, 1.0
        %v1286 = vmin.f32 %v1270, 1.0
        %v1287 = vmin.f32 %v1271, 1.0
        %v1288 = vmin.f32 %v1272, 1.0
        %v1289 = vmin.f32 %v1273, 1.0
        %v1290 = vmin.f32 %v1274, 1.0
        %v1291 = vmin.f32 %v1275, 1.0
        %v1292 = vmin.f32 %v1276, 1.0
        %v1293 = vmul.f32 %v1277, %v876
        %v1294 = vmul.f32 %v1278, %v877
        %v1295 = vmul.f32 %v1279, %v878
        %v1296 = vmul.f32 %v1280, %v879
        %v1297 = vmul.f32 %v1281, %v880
        %v1298 = vmul.f32 %v1282, %v881
        %v1299 = vmul.f32 %v1283, %v882
        %v1300 = vmul.f32 %v1284, %v883
        %v1301 = vmul.f32 %v1285, %v884
        %v1302 = vmul.f32 %v1286, %v885
        %v1303 = vmul.f32 %v1287, %v886
        %v1304 = vmul.f32 %v1288, %v887
        %v1305 = vmul.f32 %v1289, %v888
        %v1306 = vmul.f32 %v1290, %v889
        %v1307 = vmul.f32 %v1291, %v890
        %v1308 = vmul.f32 %v1292, %v891
        %v1309 = vmul.f32 %v1293, %v908
        %v1310 = vmul.f32 %v1294, %v909
        %v1311 = vmul.f32 %v1295, %v910
        %v1312 = vmul.f32 %v1296, %v911
        %v1313 = vmul.f32 %v1297, %v912
        %v1314 = vmul.f32 %v1298, %v913
        %v1315 = vmul.f32 %v1299, %v914
        %v1316 = vmul.f32 %v1300, %v915
        %v1317 = vmul.f32 %v1301, %v916
        %v1318 = vmul.f32 %v1302, %v917
        %v1319 = vmul.f32 %v1303, %v918
        %v1320 = vmul.f32 %v1304, %v919
        %v1321 = vmul.f32 %v1305, %v920
        %v1322 = vmul.f32 %v1306, %v921
        %v1323 = vmul.f32 %v1307, %v922
        %v1324 = vmul.f32 %v1308, %v923
        %v1325 = vmul.f32 %v1293, 1.03
        %v1326 = vmul.f32 %v1294, 1.03
        %v1327 = vmul.f32 %v1295, 1.03
        %v1328 = vmul.f32 %v1296, 1.03
        %v1329 = vmul.f32 %v1297, 1.03
        %v1330 = vmul.f32 %v1298, 1.03
        %v1331 = vmul.f32 %v1299, 1.03
        %v1332 = vmul.f32 %v1300, 1.03
        %v1333 = vmul.f32 %v1301, 1.03
        %v1334 = vmul.f32 %v1302, 1.03
        %v1335 = vmul.f32 %v1303, 1.03
        %v1336 = vmul.f32 %v1304, 1.03
        %v1337 = vmul.f32 %v1305, 1.03
        %v1338 = vmul.f32 %v1306, 1.03
        %v1339 = vmul.f32 %v1307, 1.03
        %v1340 = vmul.f32 %v1308, 1.03
        %v1341 = vmul.f32 %v1325, %v924
        %v1342 = vmul.f32 %v1326, %v925
        %v1343 = vmul.f32 %v1327, %v926
        %v1344 = vmul.f32 %v1328, %v927
        %v1345 = vmul.f32 %v1329, %v928
        %v1346 = vmul.f32 %v1330, %v929
        %v1347 = vmul.f32 %v1331, %v930
        %v1348 = vmul.f32 %v1332, %v931
        %v1349 = vmul.f32 %v1333, %v932
        %v1350 = vmul.f32 %v1334, %v933
        %v1351 = vmul.f32 %v1335, %v934
        %v1352 = vmul.f32 %v1336, %v935
        %v1353 = vmul.f32 %v1337, %v936
        %v1354 = vmul.f32 %v1338, %v937
        %v1355 = vmul.f32 %v1339, %v938
        %v1356 = vmul.f32 %v1340, %v939
        %v1357 = vmin.f32 %v1341, 1.0
        %v1358 = vmin.f32 %v1342, 1.0
        %v1359 = vmin.f32 %v1343, 1.0
        %v1360 = vmin.f32 %v1344, 1.0
        %v1361 = vmin.f32 %v1345, 1.0
        %v1362 = vmin.f32 %v1346, 1.0
        %v1363 = vmin.f32 %v1347, 1.0
        %v1364 = vmin.f32 %v1348, 1.0
        %v1365 = vmin.f32 %v1349, 1.0
        %v1366 = vmin.f32 %v1350, 1.0
        %v1367 = vmin.f32 %v1351, 1.0
        %v1368 = vmin.f32 %v1352, 1.0
        %v1369 = vmin.f32 %v1353, 1.0
        %v1370 = vmin.f32 %v1354, 1.0
        %v1371 = vmin.f32 %v1355, 1.0
        %v1372 = vmin.f32 %v1356, 1.0
        %v1373 = vadd.f32 %v1309, %v1357
        %v1374 = vadd.f32 %v1310, %v1358
        %v1375 = vadd.f32 %v1311, %v1359
        %v1376 = vadd.f32 %v1312, %v1360
        %v1377 = vadd.f32 %v1313, %v1361
        %v1378 = vadd.f32 %v1314, %v1362
        %v1379 = vadd.f32 %v1315, %v1363
        %v1380 = vadd.f32 %v1316, %v1364
        %v1381 = vadd.f32 %v1317, %v1365
        %v1382 = vadd.f32 %v1318, %v1366
        %v1383 = vadd.f32 %v1319, %v1367
        %v1384 = vadd.f32 %v1320, %v1368
        %v1385 = vadd.f32 %v1321, %v1369
        %v1386 = vadd.f32 %v1322, %v1370
        %v1387 = vadd.f32 %v1323, %v1371
        %v1388 = vadd.f32 %v1324, %v1372
        %s1389 = scalar_lea.vmem %s553, 128 [#allocation19]
        %1390 = vst [vmem:[%s1389] sm:$0xff] %v1373
        %1391 = vst [vmem:[%s1389 + $0x8] sm:$0xff] %v1374
        %1392 = vst [vmem:[%s1389 + $0x10] sm:$0xff] %v1375
        %1393 = vst [vmem:[%s1389 + $0x18] sm:$0xff] %v1376
        %1394 = vst [vmem:[%s1389 + $0x20] sm:$0xff] %v1377
        %1395 = vst [vmem:[%s1389 + $0x28] sm:$0xff] %v1378
        %1396 = vst [vmem:[%s1389 + $0x30] sm:$0xff] %v1379
        %1397 = vst [vmem:[%s1389 + $0x38] sm:$0xff] %v1380
        %1398 = vst [vmem:[%s1389 + $0x40] sm:$0xff] %v1381
        %1399 = vst [vmem:[%s1389 + $0x48] sm:$0xff] %v1382
        %1400 = vst [vmem:[%s1389 + $0x50] sm:$0xff] %v1383
        %1401 = vst [vmem:[%s1389 + $0x58] sm:$0xff] %v1384
        %1402 = vst [vmem:[%s1389 + $0x60] sm:$0xff] %v1385
        %1403 = vst [vmem:[%s1389 + $0x68] sm:$0xff] %v1386
        %1404 = vst [vmem:[%s1389 + $0x70] sm:$0xff] %v1387
        %1405 = vst [vmem:[%s1389 + $0x78] sm:$0xff] %v1388
        %s1406 = scalar_lea.vmem %s461, 256 [#allocation2]
        %v1407 = vld [vmem:[%s1406] sm:$0xff]
        %v1408 = vld [vmem:[%s1406 + $0x8] sm:$0xff]
        %v1409 = vld [vmem:[%s1406 + $0x10] sm:$0xff]
        %v1410 = vld [vmem:[%s1406 + $0x18] sm:$0xff]
        %v1411 = vld [vmem:[%s1406 + $0x20] sm:$0xff]
        %v1412 = vld [vmem:[%s1406 + $0x28] sm:$0xff]
        %v1413 = vld [vmem:[%s1406 + $0x30] sm:$0xff]
        %v1414 = vld [vmem:[%s1406 + $0x38] sm:$0xff]
        %v1415 = vld [vmem:[%s1406 + $0x40] sm:$0xff]
        %v1416 = vld [vmem:[%s1406 + $0x48] sm:$0xff]
        %v1417 = vld [vmem:[%s1406 + $0x50] sm:$0xff]
        %v1418 = vld [vmem:[%s1406 + $0x58] sm:$0xff]
        %v1419 = vld [vmem:[%s1406 + $0x60] sm:$0xff]
        %v1420 = vld [vmem:[%s1406 + $0x68] sm:$0xff]
        %v1421 = vld [vmem:[%s1406 + $0x70] sm:$0xff]
        %v1422 = vld [vmem:[%s1406 + $0x78] sm:$0xff]
        %v1423 = vmul.f32 %v1407, %v844
        %v1424 = vmul.f32 %v1408, %v845
        %v1425 = vmul.f32 %v1409, %v846
        %v1426 = vmul.f32 %v1410, %v847
        %v1427 = vmul.f32 %v1411, %v848
        %v1428 = vmul.f32 %v1412, %v849
        %v1429 = vmul.f32 %v1413, %v850
        %v1430 = vmul.f32 %v1414, %v851
        %v1431 = vmul.f32 %v1415, %v852
        %v1432 = vmul.f32 %v1416, %v853
        %v1433 = vmul.f32 %v1417, %v854
        %v1434 = vmul.f32 %v1418, %v855
        %v1435 = vmul.f32 %v1419, %v856
        %v1436 = vmul.f32 %v1420, %v857
        %v1437 = vmul.f32 %v1421, %v858
        %v1438 = vmul.f32 %v1422, %v859
        %v1439 = vmul.f32 %v805, 1.05
        %v1440 = vmul.f32 %v807, 1.05
        %v1441 = vmul.f32 %v810, 1.05
        %v1442 = vmul.f32 %v812, 1.05
        %v1443 = vmul.f32 %v815, 1.05
        %v1444 = vmul.f32 %v817, 1.05
        %v1445 = vmul.f32 %v820, 1.05
        %v1446 = vmul.f32 %v822, 1.05
        %v1447 = vmul.f32 %v825, 1.05
        %v1448 = vmul.f32 %v827, 1.05
        %v1449 = vmul.f32 %v830, 1.05
        %v1450 = vmul.f32 %v832, 1.05
        %v1451 = vmul.f32 %v835, 1.05
        %v1452 = vmul.f32 %v837, 1.05
        %v1453 = vmul.f32 %v840, 1.05
        %v1454 = vmul.f32 %v842, 1.05
        %v1455 = vadd.f32 %v1423, %v1439
        %v1456 = vadd.f32 %v1424, %v1440
        %v1457 = vadd.f32 %v1425, %v1441
        %v1458 = vadd.f32 %v1426, %v1442
        %v1459 = vadd.f32 %v1427, %v1443
        %v1460 = vadd.f32 %v1428, %v1444
        %v1461 = vadd.f32 %v1429, %v1445
        %v1462 = vadd.f32 %v1430, %v1446
        %v1463 = vadd.f32 %v1431, %v1447
        %v1464 = vadd.f32 %v1432, %v1448
        %v1465 = vadd.f32 %v1433, %v1449
        %v1466 = vadd.f32 %v1434, %v1450
        %v1467 = vadd.f32 %v1435, %v1451
        %v1468 = vadd.f32 %v1436, %v1452
        %v1469 = vadd.f32 %v1437, %v1453
        %v1470 = vadd.f32 %v1438, %v1454
        %v1471 = vmul.f32 %v860, -0.2
        %v1472 = vmul.f32 %v861, -0.2
        %v1473 = vmul.f32 %v862, -0.2
        %v1474 = vmul.f32 %v863, -0.2
        %v1475 = vmul.f32 %v864, -0.2
        %v1476 = vmul.f32 %v865, -0.2
        %v1477 = vmul.f32 %v866, -0.2
        %v1478 = vmul.f32 %v867, -0.2
        %v1479 = vmul.f32 %v868, -0.2
        %v1480 = vmul.f32 %v869, -0.2
        %v1481 = vmul.f32 %v870, -0.2
        %v1482 = vmul.f32 %v871, -0.2
        %v1483 = vmul.f32 %v872, -0.2
        %v1484 = vmul.f32 %v873, -0.2
        %v1485 = vmul.f32 %v874, -0.2
        %v1486 = vmul.f32 %v875, -0.2
        %v1487 = vadd.f32 %v1471, 1.0
        %v1488 = vadd.f32 %v1472, 1.0
        %v1489 = vadd.f32 %v1473, 1.0
        %v1490 = vadd.f32 %v1474, 1.0
        %v1491 = vadd.f32 %v1475, 1.0
        %v1492 = vadd.f32 %v1476, 1.0
        %v1493 = vadd.f32 %v1477, 1.0
        %v1494 = vadd.f32 %v1478, 1.0
        %v1495 = vadd.f32 %v1479, 1.0
        %v1496 = vadd.f32 %v1480, 1.0
        %v1497 = vadd.f32 %v1481, 1.0
        %v1498 = vadd.f32 %v1482, 1.0
        %v1499 = vadd.f32 %v1483, 1.0
        %v1500 = vadd.f32 %v1484, 1.0
        %v1501 = vadd.f32 %v1485, 1.0
        %v1502 = vadd.f32 %v1486, 1.0
        %v1503 = vmul.f32 %v1455, %v1487
        %v1504 = vmul.f32 %v1456, %v1488
        %v1505 = vmul.f32 %v1457, %v1489
        %v1506 = vmul.f32 %v1458, %v1490
        %v1507 = vmul.f32 %v1459, %v1491
        %v1508 = vmul.f32 %v1460, %v1492
        %v1509 = vmul.f32 %v1461, %v1493
        %v1510 = vmul.f32 %v1462, %v1494
        %v1511 = vmul.f32 %v1463, %v1495
        %v1512 = vmul.f32 %v1464, %v1496
        %v1513 = vmul.f32 %v1465, %v1497
        %v1514 = vmul.f32 %v1466, %v1498
        %v1515 = vmul.f32 %v1467, %v1499
        %v1516 = vmul.f32 %v1468, %v1500
        %v1517 = vmul.f32 %v1469, %v1501
        %v1518 = vmul.f32 %v1470, %v1502
        %v1519 = vmax.f32 %v1503, 0.0
        %v1520 = vmax.f32 %v1504, 0.0
        %v1521 = vmax.f32 %v1505, 0.0
        %v1522 = vmax.f32 %v1506, 0.0
        %v1523 = vmax.f32 %v1507, 0.0
        %v1524 = vmax.f32 %v1508, 0.0
        %v1525 = vmax.f32 %v1509, 0.0
        %v1526 = vmax.f32 %v1510, 0.0
        %v1527 = vmax.f32 %v1511, 0.0
        %v1528 = vmax.f32 %v1512, 0.0
        %v1529 = vmax.f32 %v1513, 0.0
        %v1530 = vmax.f32 %v1514, 0.0
        %v1531 = vmax.f32 %v1515, 0.0
        %v1532 = vmax.f32 %v1516, 0.0
        %v1533 = vmax.f32 %v1517, 0.0
        %v1534 = vmax.f32 %v1518, 0.0
        %v1535 = vmin.f32 %v1519, 1.0
        %v1536 = vmin.f32 %v1520, 1.0
        %v1537 = vmin.f32 %v1521, 1.0
        %v1538 = vmin.f32 %v1522, 1.0
        %v1539 = vmin.f32 %v1523, 1.0
        %v1540 = vmin.f32 %v1524, 1.0
        %v1541 = vmin.f32 %v1525, 1.0
        %v1542 = vmin.f32 %v1526, 1.0
        %v1543 = vmin.f32 %v1527, 1.0
        %v1544 = vmin.f32 %v1528, 1.0
        %v1545 = vmin.f32 %v1529, 1.0
        %v1546 = vmin.f32 %v1530, 1.0
        %v1547 = vmin.f32 %v1531, 1.0
        %v1548 = vmin.f32 %v1532, 1.0
        %v1549 = vmin.f32 %v1533, 1.0
        %v1550 = vmin.f32 %v1534, 1.0
        %v1551 = vmul.f32 %v1535, %v876
        %v1552 = vmul.f32 %v1536, %v877
        %v1553 = vmul.f32 %v1537, %v878
        %v1554 = vmul.f32 %v1538, %v879
        %v1555 = vmul.f32 %v1539, %v880
        %v1556 = vmul.f32 %v1540, %v881
        %v1557 = vmul.f32 %v1541, %v882
        %v1558 = vmul.f32 %v1542, %v883
        %v1559 = vmul.f32 %v1543, %v884
        %v1560 = vmul.f32 %v1544, %v885
        %v1561 = vmul.f32 %v1545, %v886
        %v1562 = vmul.f32 %v1546, %v887
        %v1563 = vmul.f32 %v1547, %v888
        %v1564 = vmul.f32 %v1548, %v889
        %v1565 = vmul.f32 %v1549, %v890
        %v1566 = vmul.f32 %v1550, %v891
        %v1567 = vmul.f32 %v1551, %v908
        %v1568 = vmul.f32 %v1552, %v909
        %v1569 = vmul.f32 %v1553, %v910
        %v1570 = vmul.f32 %v1554, %v911
        %v1571 = vmul.f32 %v1555, %v912
        %v1572 = vmul.f32 %v1556, %v913
        %v1573 = vmul.f32 %v1557, %v914
        %v1574 = vmul.f32 %v1558, %v915
        %v1575 = vmul.f32 %v1559, %v916
        %v1576 = vmul.f32 %v1560, %v917
        %v1577 = vmul.f32 %v1561, %v918
        %v1578 = vmul.f32 %v1562, %v919
        %v1579 = vmul.f32 %v1563, %v920
        %v1580 = vmul.f32 %v1564, %v921
        %v1581 = vmul.f32 %v1565, %v922
        %v1582 = vmul.f32 %v1566, %v923
        %v1583 = vmul.f32 %v1551, %v924
        %v1584 = vmul.f32 %v1552, %v925
        %v1585 = vmul.f32 %v1553, %v926
        %v1586 = vmul.f32 %v1554, %v927
        %v1587 = vmul.f32 %v1555, %v928
        %v1588 = vmul.f32 %v1556, %v929
        %v1589 = vmul.f32 %v1557, %v930
        %v1590 = vmul.f32 %v1558, %v931
        %v1591 = vmul.f32 %v1559, %v932
        %v1592 = vmul.f32 %v1560, %v933
        %v1593 = vmul.f32 %v1561, %v934
        %v1594 = vmul.f32 %v1562, %v935
        %v1595 = vmul.f32 %v1563, %v936
        %v1596 = vmul.f32 %v1564, %v937
        %v1597 = vmul.f32 %v1565, %v938
        %v1598 = vmul.f32 %v1566, %v939
        %v1599 = vmin.f32 %v1583, 1.0
        %v1600 = vmin.f32 %v1584, 1.0
        %v1601 = vmin.f32 %v1585, 1.0
        %v1602 = vmin.f32 %v1586, 1.0
        %v1603 = vmin.f32 %v1587, 1.0
        %v1604 = vmin.f32 %v1588, 1.0
        %v1605 = vmin.f32 %v1589, 1.0
        %v1606 = vmin.f32 %v1590, 1.0
        %v1607 = vmin.f32 %v1591, 1.0
        %v1608 = vmin.f32 %v1592, 1.0
        %v1609 = vmin.f32 %v1593, 1.0
        %v1610 = vmin.f32 %v1594, 1.0
        %v1611 = vmin.f32 %v1595, 1.0
        %v1612 = vmin.f32 %v1596, 1.0
        %v1613 = vmin.f32 %v1597, 1.0
        %v1614 = vmin.f32 %v1598, 1.0
        %v1615 = vadd.f32 %v1567, %v1599
        %v1616 = vadd.f32 %v1568, %v1600
        %v1617 = vadd.f32 %v1569, %v1601
        %v1618 = vadd.f32 %v1570, %v1602
        %v1619 = vadd.f32 %v1571, %v1603
        %v1620 = vadd.f32 %v1572, %v1604
        %v1621 = vadd.f32 %v1573, %v1605
        %v1622 = vadd.f32 %v1574, %v1606
        %v1623 = vadd.f32 %v1575, %v1607
        %v1624 = vadd.f32 %v1576, %v1608
        %v1625 = vadd.f32 %v1577, %v1609
        %v1626 = vadd.f32 %v1578, %v1610
        %v1627 = vadd.f32 %v1579, %v1611
        %v1628 = vadd.f32 %v1580, %v1612
        %v1629 = vadd.f32 %v1581, %v1613
        %v1630 = vadd.f32 %v1582, %v1614
        %s1631 = scalar_lea.vmem %s553, 256 [#allocation19]
        %1632 = vst [vmem:[%s1631] sm:$0xff] %v1615
        %1633 = vst [vmem:[%s1631 + $0x8] sm:$0xff] %v1616
        %1634 = vst [vmem:[%s1631 + $0x10] sm:$0xff] %v1617
        %1635 = vst [vmem:[%s1631 + $0x18] sm:$0xff] %v1618
        %1636 = vst [vmem:[%s1631 + $0x20] sm:$0xff] %v1619
        %1637 = vst [vmem:[%s1631 + $0x28] sm:$0xff] %v1620
        %1638 = vst [vmem:[%s1631 + $0x30] sm:$0xff] %v1621
        %1639 = vst [vmem:[%s1631 + $0x38] sm:$0xff] %v1622
        %1640 = vst [vmem:[%s1631 + $0x40] sm:$0xff] %v1623
        %1641 = vst [vmem:[%s1631 + $0x48] sm:$0xff] %v1624
        %1642 = vst [vmem:[%s1631 + $0x50] sm:$0xff] %v1625
        %1643 = vst [vmem:[%s1631 + $0x58] sm:$0xff] %v1626
        %1644 = vst [vmem:[%s1631 + $0x60] sm:$0xff] %v1627
        %1645 = vst [vmem:[%s1631 + $0x68] sm:$0xff] %v1628
        %1646 = vst [vmem:[%s1631 + $0x70] sm:$0xff] %v1629
        %1647 = vst [vmem:[%s1631 + $0x78] sm:$0xff] %v1630
        %v1648 = vld [vmem:[%s553] sm:$0xff]
        %v1649 = vld [vmem:[%s553 + $0x8] sm:$0xff]
        %v1650 = vld [vmem:[%s553 + $0x10] sm:$0xff]
        %v1651 = vld [vmem:[%s553 + $0x18] sm:$0xff]
        %v1652 = vld [vmem:[%s553 + $0x20] sm:$0xff]
        %v1653 = vld [vmem:[%s553 + $0x28] sm:$0xff]
        %v1654 = vld [vmem:[%s553 + $0x30] sm:$0xff]
        %v1655 = vld [vmem:[%s553 + $0x38] sm:$0xff]
        %v1656 = vld [vmem:[%s553 + $0x40] sm:$0xff]
        %v1657 = vld [vmem:[%s553 + $0x48] sm:$0xff]
        %v1658 = vld [vmem:[%s553 + $0x50] sm:$0xff]
        %v1659 = vld [vmem:[%s553 + $0x58] sm:$0xff]
        %v1660 = vld [vmem:[%s553 + $0x60] sm:$0xff]
        %v1661 = vld [vmem:[%s553 + $0x68] sm:$0xff]
        %v1662 = vld [vmem:[%s553 + $0x70] sm:$0xff]
        %v1663 = vld [vmem:[%s553 + $0x78] sm:$0xff]
        %v1664 = vmul.f32 %v1648, 0.299
        %v1665 = vmul.f32 %v1649, 0.299
        %v1666 = vmul.f32 %v1650, 0.299
        %v1667 = vmul.f32 %v1651, 0.299
        %v1668 = vmul.f32 %v1652, 0.299
        %v1669 = vmul.f32 %v1653, 0.299
        %v1670 = vmul.f32 %v1654, 0.299
        %v1671 = vmul.f32 %v1655, 0.299
        %v1672 = vmul.f32 %v1656, 0.299
        %v1673 = vmul.f32 %v1657, 0.299
        %v1674 = vmul.f32 %v1658, 0.299
        %v1675 = vmul.f32 %v1659, 0.299
        %v1676 = vmul.f32 %v1660, 0.299
        %v1677 = vmul.f32 %v1661, 0.299
        %v1678 = vmul.f32 %v1662, 0.299
        %v1679 = vmul.f32 %v1663, 0.299
        %v1680 = vld [vmem:[%s1389] sm:$0xff]
        %v1681 = vld [vmem:[%s1389 + $0x8] sm:$0xff]
        %v1682 = vld [vmem:[%s1389 + $0x10] sm:$0xff]
        %v1683 = vld [vmem:[%s1389 + $0x18] sm:$0xff]
        %v1684 = vld [vmem:[%s1389 + $0x20] sm:$0xff]
        %v1685 = vld [vmem:[%s1389 + $0x28] sm:$0xff]
        %v1686 = vld [vmem:[%s1389 + $0x30] sm:$0xff]
        %v1687 = vld [vmem:[%s1389 + $0x38] sm:$0xff]
        %v1688 = vld [vmem:[%s1389 + $0x40] sm:$0xff]
        %v1689 = vld [vmem:[%s1389 + $0x48] sm:$0xff]
        %v1690 = vld [vmem:[%s1389 + $0x50] sm:$0xff]
        %v1691 = vld [vmem:[%s1389 + $0x58] sm:$0xff]
        %v1692 = vld [vmem:[%s1389 + $0x60] sm:$0xff]
        %v1693 = vld [vmem:[%s1389 + $0x68] sm:$0xff]
        %v1694 = vld [vmem:[%s1389 + $0x70] sm:$0xff]
        %v1695 = vld [vmem:[%s1389 + $0x78] sm:$0xff]
        %v1696 = vmul.f32 %v1680, 0.587
        %v1697 = vmul.f32 %v1681, 0.587
        %v1698 = vmul.f32 %v1682, 0.587
        %v1699 = vmul.f32 %v1683, 0.587
        %v1700 = vmul.f32 %v1684, 0.587
        %v1701 = vmul.f32 %v1685, 0.587
        %v1702 = vmul.f32 %v1686, 0.587
        %v1703 = vmul.f32 %v1687, 0.587
        %v1704 = vmul.f32 %v1688, 0.587
        %v1705 = vmul.f32 %v1689, 0.587
        %v1706 = vmul.f32 %v1690, 0.587
        %v1707 = vmul.f32 %v1691, 0.587
        %v1708 = vmul.f32 %v1692, 0.587
        %v1709 = vmul.f32 %v1693, 0.587
        %v1710 = vmul.f32 %v1694, 0.587
        %v1711 = vmul.f32 %v1695, 0.587
        %v1712 = vadd.f32 %v1664, %v1696
        %v1713 = vadd.f32 %v1665, %v1697
        %v1714 = vadd.f32 %v1666, %v1698
        %v1715 = vadd.f32 %v1667, %v1699
        %v1716 = vadd.f32 %v1668, %v1700
        %v1717 = vadd.f32 %v1669, %v1701
        %v1718 = vadd.f32 %v1670, %v1702
        %v1719 = vadd.f32 %v1671, %v1703
        %v1720 = vadd.f32 %v1672, %v1704
        %v1721 = vadd.f32 %v1673, %v1705
        %v1722 = vadd.f32 %v1674, %v1706
        %v1723 = vadd.f32 %v1675, %v1707
        %v1724 = vadd.f32 %v1676, %v1708
        %v1725 = vadd.f32 %v1677, %v1709
        %v1726 = vadd.f32 %v1678, %v1710
        %v1727 = vadd.f32 %v1679, %v1711
        %v1728 = vld [vmem:[%s1631] sm:$0xff]
        %v1729 = vld [vmem:[%s1631 + $0x8] sm:$0xff]
        %v1730 = vld [vmem:[%s1631 + $0x10] sm:$0xff]
        %v1731 = vld [vmem:[%s1631 + $0x18] sm:$0xff]
        %v1732 = vld [vmem:[%s1631 + $0x20] sm:$0xff]
        %v1733 = vld [vmem:[%s1631 + $0x28] sm:$0xff]
        %v1734 = vld [vmem:[%s1631 + $0x30] sm:$0xff]
        %v1735 = vld [vmem:[%s1631 + $0x38] sm:$0xff]
        %v1736 = vld [vmem:[%s1631 + $0x40] sm:$0xff]
        %v1737 = vld [vmem:[%s1631 + $0x48] sm:$0xff]
        %v1738 = vld [vmem:[%s1631 + $0x50] sm:$0xff]
        %v1739 = vld [vmem:[%s1631 + $0x58] sm:$0xff]
        %v1740 = vld [vmem:[%s1631 + $0x60] sm:$0xff]
        %v1741 = vld [vmem:[%s1631 + $0x68] sm:$0xff]
        %v1742 = vld [vmem:[%s1631 + $0x70] sm:$0xff]
        %v1743 = vld [vmem:[%s1631 + $0x78] sm:$0xff]
        %v1744 = vmul.f32 %v1728, 0.114
        %v1745 = vmul.f32 %v1729, 0.114
        %v1746 = vmul.f32 %v1730, 0.114
        %v1747 = vmul.f32 %v1731, 0.114
        %v1748 = vmul.f32 %v1732, 0.114
        %v1749 = vmul.f32 %v1733, 0.114
        %v1750 = vmul.f32 %v1734, 0.114
        %v1751 = vmul.f32 %v1735, 0.114
        %v1752 = vmul.f32 %v1736, 0.114
        %v1753 = vmul.f32 %v1737, 0.114
        %v1754 = vmul.f32 %v1738, 0.114
        %v1755 = vmul.f32 %v1739, 0.114
        %v1756 = vmul.f32 %v1740, 0.114
        %v1757 = vmul.f32 %v1741, 0.114
        %v1758 = vmul.f32 %v1742, 0.114
        %v1759 = vmul.f32 %v1743, 0.114
        %v1760 = vadd.f32 %v1712, %v1744
        %v1761 = vadd.f32 %v1713, %v1745
        %v1762 = vadd.f32 %v1714, %v1746
        %v1763 = vadd.f32 %v1715, %v1747
        %v1764 = vadd.f32 %v1716, %v1748
        %v1765 = vadd.f32 %v1717, %v1749
        %v1766 = vadd.f32 %v1718, %v1750
        %v1767 = vadd.f32 %v1719, %v1751
        %v1768 = vadd.f32 %v1720, %v1752
        %v1769 = vadd.f32 %v1721, %v1753
        %v1770 = vadd.f32 %v1722, %v1754
        %v1771 = vadd.f32 %v1723, %v1755
        %v1772 = vadd.f32 %v1724, %v1756
        %v1773 = vadd.f32 %v1725, %v1757
        %v1774 = vadd.f32 %v1726, %v1758
        %v1775 = vadd.f32 %v1727, %v1759
        %vm1776 = vcmp.gt.f32.partialorder %v1760, 0.7
        %vm1777 = vcmp.gt.f32.partialorder %v1761, 0.7
        %vm1778 = vcmp.gt.f32.partialorder %v1762, 0.7
        %vm1779 = vcmp.gt.f32.partialorder %v1763, 0.7
        %vm1780 = vcmp.gt.f32.partialorder %v1764, 0.7
        %vm1781 = vcmp.gt.f32.partialorder %v1765, 0.7
        %vm1782 = vcmp.gt.f32.partialorder %v1766, 0.7
        %vm1783 = vcmp.gt.f32.partialorder %v1767, 0.7
        %vm1784 = vcmp.gt.f32.partialorder %v1768, 0.7
        %vm1785 = vcmp.gt.f32.partialorder %v1769, 0.7
        %vm1786 = vcmp.gt.f32.partialorder %v1770, 0.7
        %vm1787 = vcmp.gt.f32.partialorder %v1771, 0.7
        %vm1788 = vcmp.gt.f32.partialorder %v1772, 0.7
        %vm1789 = vcmp.gt.f32.partialorder %v1773, 0.7
        %vm1790 = vcmp.gt.f32.partialorder %v1774, 0.7
        %vm1791 = vcmp.gt.f32.partialorder %v1775, 0.7
        %v1792 = vsel %vm1776, 1, 0
        %v1793 = vsel %vm1777, 1, 0
        %v1794 = vsel %vm1778, 1, 0
        %v1795 = vsel %vm1779, 1, 0
        %v1796 = vsel %vm1780, 1, 0
        %v1797 = vsel %vm1781, 1, 0
        %v1798 = vsel %vm1782, 1, 0
        %v1799 = vsel %vm1783, 1, 0
        %v1800 = vsel %vm1784, 1, 0
        %v1801 = vsel %vm1785, 1, 0
        %v1802 = vsel %vm1786, 1, 0
        %v1803 = vsel %vm1787, 1, 0
        %v1804 = vsel %vm1788, 1, 0
        %v1805 = vsel %vm1789, 1, 0
        %v1806 = vsel %vm1790, 1, 0
        %v1807 = vsel %vm1791, 1, 0
        %v1808 = vcvt.s32.f32 %v1792
        %v1809 = vcvt.s32.f32 %v1793
        %v1810 = vcvt.s32.f32 %v1794
        %v1811 = vcvt.s32.f32 %v1795
        %v1812 = vcvt.s32.f32 %v1796
        %v1813 = vcvt.s32.f32 %v1797
        %v1814 = vcvt.s32.f32 %v1798
        %v1815 = vcvt.s32.f32 %v1799
        %v1816 = vcvt.s32.f32 %v1800
        %v1817 = vcvt.s32.f32 %v1801
        %v1818 = vcvt.s32.f32 %v1802
        %v1819 = vcvt.s32.f32 %v1803
        %v1820 = vcvt.s32.f32 %v1804
        %v1821 = vcvt.s32.f32 %v1805
        %v1822 = vcvt.s32.f32 %v1806
        %v1823 = vcvt.s32.f32 %v1807
        %v1824 = vpack.c.bf16 %v1809, %v1808
        %v1825 = vpack.c.bf16 %v1811, %v1810
        %v1826 = vpack.c.bf16 %v1813, %v1812
        %v1827 = vpack.c.bf16 %v1815, %v1814
        %v1828 = vpack.c.bf16 %v1817, %v1816
        %v1829 = vpack.c.bf16 %v1819, %v1818
        %v1830 = vpack.c.bf16 %v1821, %v1820
        %v1831 = vpack.c.bf16 %v1823, %v1822
        %v1832 = vld [vmem:[#allocation17] sm:$0xf]
        %v1833 = vld [vmem:[#allocation17 + $0x4] sm:$0xf]
        %v1834 = vld [vmem:[#allocation17 + $0x8] sm:$0xf]
        %v1835 = vld [vmem:[#allocation17 + $0xc] sm:$0xf]
        %v1836 = vld [vmem:[#allocation17 + $0x10] sm:$0xf]
        %v1837 = vld [vmem:[#allocation17 + $0x14] sm:$0xf]
        %v1838 = vld [vmem:[#allocation17 + $0x18] sm:$0xf]
        %v1839 = vld [vmem:[#allocation17 + $0x1c] sm:$0xf]
        %v1840 = vld [vmem:[#allocation17 + $0x20] sm:$0xf]
        %v1841 = vld [vmem:[#allocation17 + $0x24] sm:$0xf]
        %v1842 = vld [vmem:[#allocation17 + $0x28] sm:$0xf]
        %v1843 = vld [vmem:[#allocation17 + $0x2c] sm:$0xf]
        %v1844 = vld [vmem:[#allocation17 + $0x30] sm:$0xf]
        %v1845 = vld [vmem:[#allocation17 + $0x34] sm:$0xf]
        %v1846 = vld [vmem:[#allocation17 + $0x38] sm:$0xf]
        %v1847 = vld [vmem:[#allocation17 + $0x3c] sm:$0xf]
        %v1864 = vunpack.c.l.b16 %v1832
        %v1865 = vunpack.c.l.b16 %v1833
        %v1866 = vunpack.c.l.b16 %v1834
        %v1867 = vunpack.c.l.b16 %v1835
        %v1868 = vunpack.c.l.b16 %v1836
        %v1869 = vunpack.c.l.b16 %v1837
        %v1870 = vunpack.c.l.b16 %v1838
        %v1871 = vunpack.c.l.b16 %v1839
        %v1872 = vunpack.c.l.b16 %v1840
        %v1873 = vunpack.c.l.b16 %v1841
        %v1874 = vunpack.c.l.b16 %v1842
        %v1875 = vunpack.c.l.b16 %v1843
        %v1876 = vunpack.c.l.b16 %v1844
        %v1877 = vunpack.c.l.b16 %v1845
        %v1878 = vunpack.c.l.b16 %v1846
        %v1879 = vunpack.c.l.b16 %v1847
        %v1880 = vpack.c.b16 %v1865, %v1864
        %v1881 = vpack.c.b16 %v1867, %v1866
        %v1882 = vpack.c.b16 %v1869, %v1868
        %v1883 = vpack.c.b16 %v1871, %v1870
        %v1884 = vpack.c.b16 %v1873, %v1872
        %v1885 = vpack.c.b16 %v1875, %v1874
        %v1886 = vpack.c.b16 %v1877, %v1876
        %v1887 = vpack.c.b16 %v1879, %v1878
        %1896 = vmatpush.bf16.msra.mxu0 %v1887
        %1897 = vmatpush.bf16.msra.mxu0 %v1886
        %1898 = vmatpush.bf16.msra.mxu0 %v1885
        %1899 = vmatpush.bf16.msra.mxu0 %v1884
        %1900 = vmatpush.bf16.msra.mxu0 %v1883
        %1901 = vmatpush.bf16.msra.mxu0 %v1882
        %1902 = vmatpush.bf16.msra.mxu0 %v1881
        %1903 = vmatpush.bf16.msra.mxu0 %v1880
        %1904 = vmatmul.bf16.gmra.mxu0 %v1824
        %v1905 = vpop.f32.mrf.mxu0
        %v1906 = vadd.f32 0.0, %v1905
        %v1907 = vpop.f32.mrf.mxu0
        %v1908 = vadd.f32 0.0, %v1907
        %1909 = vmatmul.bf16.gmra.mxu0 %v1825
        %v1910 = vpop.f32.mrf.mxu0
        %v1911 = vadd.f32 0.0, %v1910
        %v1912 = vpop.f32.mrf.mxu0
        %v1913 = vadd.f32 0.0, %v1912
        %1914 = vmatmul.bf16.gmra.mxu0 %v1826
        %v1915 = vpop.f32.mrf.mxu0
        %v1916 = vadd.f32 0.0, %v1915
        %v1917 = vpop.f32.mrf.mxu0
        %v1918 = vadd.f32 0.0, %v1917
        %1919 = vmatmul.bf16.gmra.mxu0 %v1827
        %v1920 = vpop.f32.mrf.mxu0
        %v1921 = vadd.f32 0.0, %v1920
        %v1922 = vpop.f32.mrf.mxu0
        %v1923 = vadd.f32 0.0, %v1922
        %1924 = vmatmul.bf16.gmra.mxu0 %v1828
        %v1925 = vpop.f32.mrf.mxu0
        %v1926 = vadd.f32 0.0, %v1925
        %v1927 = vpop.f32.mrf.mxu0
        %v1928 = vadd.f32 0.0, %v1927
        %1929 = vmatmul.bf16.gmra.mxu0 %v1829
        %v1930 = vpop.f32.mrf.mxu0
        %v1931 = vadd.f32 0.0, %v1930
        %v1932 = vpop.f32.mrf.mxu0
        %v1933 = vadd.f32 0.0, %v1932
        %1934 = vmatmul.bf16.gmra.mxu0 %v1830
        %v1935 = vpop.f32.mrf.mxu0
        %v1936 = vadd.f32 0.0, %v1935
        %v1937 = vpop.f32.mrf.mxu0
        %v1938 = vadd.f32 0.0, %v1937
        %1939 = vmatmul.bf16.gmra.mxu0 %v1831
        %v1940 = vpop.f32.mrf.mxu0
        %v1941 = vadd.f32 0.0, %v1940
        %v1942 = vpop.f32.mrf.mxu0
        %v1943 = vadd.f32 0.0, %v1942
        %1944 = vdwg.mxu0
        %v1945 = vld [vmem:[#allocation16] sm:$0xf]
        %v1946 = vld [vmem:[#allocation16 + $0x4] sm:$0xf]
        %v1947 = vld [vmem:[#allocation16 + $0x8] sm:$0xf]
        %v1948 = vld [vmem:[#allocation16 + $0xc] sm:$0xf]
        %v1949 = vld [vmem:[#allocation16 + $0x10] sm:$0xf]
        %v1950 = vld [vmem:[#allocation16 + $0x14] sm:$0xf]
        %v1951 = vld [vmem:[#allocation16 + $0x18] sm:$0xf]
        %v1952 = vld [vmem:[#allocation16 + $0x1c] sm:$0xf]
        %v1953 = vld [vmem:[#allocation16 + $0x20] sm:$0xf]
        %v1954 = vld [vmem:[#allocation16 + $0x24] sm:$0xf]
        %v1955 = vld [vmem:[#allocation16 + $0x28] sm:$0xf]
        %v1956 = vld [vmem:[#allocation16 + $0x2c] sm:$0xf]
        %v1957 = vld [vmem:[#allocation16 + $0x30] sm:$0xf]
        %v1958 = vld [vmem:[#allocation16 + $0x34] sm:$0xf]
        %v1959 = vld [vmem:[#allocation16 + $0x38] sm:$0xf]
        %v1960 = vld [vmem:[#allocation16 + $0x3c] sm:$0xf]
        %v1961 = vpack.c.bf16 %v1908, %v1906
        %v1962 = vpack.c.bf16 %v1913, %v1911
        %v1963 = vpack.c.bf16 %v1918, %v1916
        %v1964 = vpack.c.bf16 %v1923, %v1921
        %v1965 = vpack.c.bf16 %v1928, %v1926
        %v1966 = vpack.c.bf16 %v1933, %v1931
        %v1967 = vpack.c.bf16 %v1938, %v1936
        %v1968 = vpack.c.bf16 %v1943, %v1941
        %v1985 = vunpack.c.l.b16 %v1945
        %v1986 = vunpack.c.l.b16 %v1946
        %v1987 = vunpack.c.l.b16 %v1947
        %v1988 = vunpack.c.l.b16 %v1948
        %v1989 = vunpack.c.l.b16 %v1949
        %v1990 = vunpack.c.l.b16 %v1950
        %v1991 = vunpack.c.l.b16 %v1951
        %v1992 = vunpack.c.l.b16 %v1952
        %v1993 = vunpack.c.l.b16 %v1953
        %v1994 = vunpack.c.l.b16 %v1954
        %v1995 = vunpack.c.l.b16 %v1955
        %v1996 = vunpack.c.l.b16 %v1956
        %v1997 = vunpack.c.l.b16 %v1957
        %v1998 = vunpack.c.l.b16 %v1958
        %v1999 = vunpack.c.l.b16 %v1959
        %v2000 = vunpack.c.l.b16 %v1960
        %v2001 = vpack.c.b16 %v1986, %v1985
        %v2002 = vpack.c.b16 %v1988, %v1987
        %v2003 = vpack.c.b16 %v1990, %v1989
        %v2004 = vpack.c.b16 %v1992, %v1991
        %v2005 = vpack.c.b16 %v1994, %v1993
        %v2006 = vpack.c.b16 %v1996, %v1995
        %v2007 = vpack.c.b16 %v1998, %v1997
        %v2008 = vpack.c.b16 %v2000, %v1999
        %2017 = vmatpush.bf16.msra.mxu0 %v1968
        %2018 = vmatpush.bf16.msra.mxu0 %v1967
        %2019 = vmatpush.bf16.msra.mxu0 %v1966
        %2020 = vmatpush.bf16.msra.mxu0 %v1965
        %2021 = vmatpush.bf16.msra.mxu0 %v1964
        %2022 = vmatpush.bf16.msra.mxu0 %v1963
        %2023 = vmatpush.bf16.msra.mxu0 %v1962
        %2024 = vmatpush.bf16.msra.mxu0 %v1961
        %2025 = vmatmul.bf16.gmra.mxu0 %v2001
        %v2026 = vpop.f32.mrf.mxu0
        %v2027 = vadd.f32 0.0, %v2026
        %v2028 = vpop.f32.mrf.mxu0
        %v2029 = vadd.f32 0.0, %v2028
        %2030 = vmatmul.bf16.gmra.mxu0 %v2002
        %v2031 = vpop.f32.mrf.mxu0
        %v2032 = vadd.f32 0.0, %v2031
        %v2033 = vpop.f32.mrf.mxu0
        %v2034 = vadd.f32 0.0, %v2033
        %2035 = vmatmul.bf16.gmra.mxu0 %v2003
        %v2036 = vpop.f32.mrf.mxu0
        %v2037 = vadd.f32 0.0, %v2036
        %v2038 = vpop.f32.mrf.mxu0
        %v2039 = vadd.f32 0.0, %v2038
        %2040 = vmatmul.bf16.gmra.mxu0 %v2004
        %v2041 = vpop.f32.mrf.mxu0
        %v2042 = vadd.f32 0.0, %v2041
        %v2043 = vpop.f32.mrf.mxu0
        %v2044 = vadd.f32 0.0, %v2043
        %2045 = vmatmul.bf16.gmra.mxu0 %v2005
        %v2046 = vpop.f32.mrf.mxu0
        %v2047 = vadd.f32 0.0, %v2046
        %v2048 = vpop.f32.mrf.mxu0
        %v2049 = vadd.f32 0.0, %v2048
        %2050 = vmatmul.bf16.gmra.mxu0 %v2006
        %v2051 = vpop.f32.mrf.mxu0
        %v2052 = vadd.f32 0.0, %v2051
        %v2053 = vpop.f32.mrf.mxu0
        %v2054 = vadd.f32 0.0, %v2053
        %2055 = vmatmul.bf16.gmra.mxu0 %v2007
        %v2056 = vpop.f32.mrf.mxu0
        %v2057 = vadd.f32 0.0, %v2056
        %v2058 = vpop.f32.mrf.mxu0
        %v2059 = vadd.f32 0.0, %v2058
        %2060 = vmatmul.bf16.gmra.mxu0 %v2008
        %v2061 = vpop.f32.mrf.mxu0
        %v2062 = vadd.f32 0.0, %v2061
        %v2063 = vpop.f32.mrf.mxu0
        %v2064 = vadd.f32 0.0, %v2063
        %2065 = vdwg.mxu0
        %v2066 = vmul.f32 %v2027, 1.05
        %v2067 = vmul.f32 %v2029, 1.05
        %v2068 = vmul.f32 %v2032, 1.05
        %v2069 = vmul.f32 %v2034, 1.05
        %v2070 = vmul.f32 %v2037, 1.05
        %v2071 = vmul.f32 %v2039, 1.05
        %v2072 = vmul.f32 %v2042, 1.05
        %v2073 = vmul.f32 %v2044, 1.05
        %v2074 = vmul.f32 %v2047, 1.05
        %v2075 = vmul.f32 %v2049, 1.05
        %v2076 = vmul.f32 %v2052, 1.05
        %v2077 = vmul.f32 %v2054, 1.05
        %v2078 = vmul.f32 %v2057, 1.05
        %v2079 = vmul.f32 %v2059, 1.05
        %v2080 = vmul.f32 %v2062, 1.05
        %v2081 = vmul.f32 %v2064, 1.05
        %v2082 = vadd.f32 %v1648, %v2066
        %v2083 = vadd.f32 %v1649, %v2067
        %v2084 = vadd.f32 %v1650, %v2068
        %v2085 = vadd.f32 %v1651, %v2069
        %v2086 = vadd.f32 %v1652, %v2070
        %v2087 = vadd.f32 %v1653, %v2071
        %v2088 = vadd.f32 %v1654, %v2072
        %v2089 = vadd.f32 %v1655, %v2073
        %v2090 = vadd.f32 %v1656, %v2074
        %v2091 = vadd.f32 %v1657, %v2075
        %v2092 = vadd.f32 %v1658, %v2076
        %v2093 = vadd.f32 %v1659, %v2077
        %v2094 = vadd.f32 %v1660, %v2078
        %v2095 = vadd.f32 %v1661, %v2079
        %v2096 = vadd.f32 %v1662, %v2080
        %v2097 = vadd.f32 %v1663, %v2081
        %v2098 = vmin.f32 %v2082, 1.0
        %v2099 = vmin.f32 %v2083, 1.0
        %v2100 = vmin.f32 %v2084, 1.0
        %v2101 = vmin.f32 %v2085, 1.0
        %v2102 = vmin.f32 %v2086, 1.0
        %v2103 = vmin.f32 %v2087, 1.0
        %v2104 = vmin.f32 %v2088, 1.0
        %v2105 = vmin.f32 %v2089, 1.0
        %v2106 = vmin.f32 %v2090, 1.0
        %v2107 = vmin.f32 %v2091, 1.0
        %v2108 = vmin.f32 %v2092, 1.0
        %v2109 = vmin.f32 %v2093, 1.0
        %v2110 = vmin.f32 %v2094, 1.0
        %v2111 = vmin.f32 %v2095, 1.0
        %v2112 = vmin.f32 %v2096, 1.0
        %v2113 = vmin.f32 %v2097, 1.0
        %2114 = vst [vmem:[%s553] sm:$0xff] %v2098
        %2115 = vst [vmem:[%s553 + $0x8] sm:$0xff] %v2099
        %2116 = vst [vmem:[%s553 + $0x10] sm:$0xff] %v2100
        %2117 = vst [vmem:[%s553 + $0x18] sm:$0xff] %v2101
        %2118 = vst [vmem:[%s553 + $0x20] sm:$0xff] %v2102
        %2119 = vst [vmem:[%s553 + $0x28] sm:$0xff] %v2103
        %2120 = vst [vmem:[%s553 + $0x30] sm:$0xff] %v2104
        %2121 = vst [vmem:[%s553 + $0x38] sm:$0xff] %v2105
        %2122 = vst [vmem:[%s553 + $0x40] sm:$0xff] %v2106
        %2123 = vst [vmem:[%s553 + $0x48] sm:$0xff] %v2107
        %2124 = vst [vmem:[%s553 + $0x50] sm:$0xff] %v2108
        %2125 = vst [vmem:[%s553 + $0x58] sm:$0xff] %v2109
        %2126 = vst [vmem:[%s553 + $0x60] sm:$0xff] %v2110
        %2127 = vst [vmem:[%s553 + $0x68] sm:$0xff] %v2111
        %2128 = vst [vmem:[%s553 + $0x70] sm:$0xff] %v2112
        %2129 = vst [vmem:[%s553 + $0x78] sm:$0xff] %v2113
        %v2130 = vld [vmem:[%s1389] sm:$0xff]
        %v2131 = vld [vmem:[%s1389 + $0x8] sm:$0xff]
        %v2132 = vld [vmem:[%s1389 + $0x10] sm:$0xff]
        %v2133 = vld [vmem:[%s1389 + $0x18] sm:$0xff]
        %v2134 = vld [vmem:[%s1389 + $0x20] sm:$0xff]
        %v2135 = vld [vmem:[%s1389 + $0x28] sm:$0xff]
        %v2136 = vld [vmem:[%s1389 + $0x30] sm:$0xff]
        %v2137 = vld [vmem:[%s1389 + $0x38] sm:$0xff]
        %v2138 = vld [vmem:[%s1389 + $0x40] sm:$0xff]
        %v2139 = vld [vmem:[%s1389 + $0x48] sm:$0xff]
        %v2140 = vld [vmem:[%s1389 + $0x50] sm:$0xff]
        %v2141 = vld [vmem:[%s1389 + $0x58] sm:$0xff]
        %v2142 = vld [vmem:[%s1389 + $0x60] sm:$0xff]
        %v2143 = vld [vmem:[%s1389 + $0x68] sm:$0xff]
        %v2144 = vld [vmem:[%s1389 + $0x70] sm:$0xff]
        %v2145 = vld [vmem:[%s1389 + $0x78] sm:$0xff]
        %v2146 = vmul.f32 %v2027, 1.03
        %v2147 = vmul.f32 %v2029, 1.03
        %v2148 = vmul.f32 %v2032, 1.03
        %v2149 = vmul.f32 %v2034, 1.03
        %v2150 = vmul.f32 %v2037, 1.03
        %v2151 = vmul.f32 %v2039, 1.03
        %v2152 = vmul.f32 %v2042, 1.03
        %v2153 = vmul.f32 %v2044, 1.03
        %v2154 = vmul.f32 %v2047, 1.03
        %v2155 = vmul.f32 %v2049, 1.03
        %v2156 = vmul.f32 %v2052, 1.03
        %v2157 = vmul.f32 %v2054, 1.03
        %v2158 = vmul.f32 %v2057, 1.03
        %v2159 = vmul.f32 %v2059, 1.03
        %v2160 = vmul.f32 %v2062, 1.03
        %v2161 = vmul.f32 %v2064, 1.03
        %v2162 = vadd.f32 %v2130, %v2146
        %v2163 = vadd.f32 %v2131, %v2147
        %v2164 = vadd.f32 %v2132, %v2148
        %v2165 = vadd.f32 %v2133, %v2149
        %v2166 = vadd.f32 %v2134, %v2150
        %v2167 = vadd.f32 %v2135, %v2151
        %v2168 = vadd.f32 %v2136, %v2152
        %v2169 = vadd.f32 %v2137, %v2153
        %v2170 = vadd.f32 %v2138, %v2154
        %v2171 = vadd.f32 %v2139, %v2155
        %v2172 = vadd.f32 %v2140, %v2156
        %v2173 = vadd.f32 %v2141, %v2157
        %v2174 = vadd.f32 %v2142, %v2158
        %v2175 = vadd.f32 %v2143, %v2159
        %v2176 = vadd.f32 %v2144, %v2160
        %v2177 = vadd.f32 %v2145, %v2161
        %v2178 = vmin.f32 %v2162, 1.0
        %v2179 = vmin.f32 %v2163, 1.0
        %v2180 = vmin.f32 %v2164, 1.0
        %v2181 = vmin.f32 %v2165, 1.0
        %v2182 = vmin.f32 %v2166, 1.0
        %v2183 = vmin.f32 %v2167, 1.0
        %v2184 = vmin.f32 %v2168, 1.0
        %v2185 = vmin.f32 %v2169, 1.0
        %v2186 = vmin.f32 %v2170, 1.0
        %v2187 = vmin.f32 %v2171, 1.0
        %v2188 = vmin.f32 %v2172, 1.0
        %v2189 = vmin.f32 %v2173, 1.0
        %v2190 = vmin.f32 %v2174, 1.0
        %v2191 = vmin.f32 %v2175, 1.0
        %v2192 = vmin.f32 %v2176, 1.0
        %v2193 = vmin.f32 %v2177, 1.0
        %2194 = vst [vmem:[%s1389] sm:$0xff] %v2178
        %2195 = vst [vmem:[%s1389 + $0x8] sm:$0xff] %v2179
        %2196 = vst [vmem:[%s1389 + $0x10] sm:$0xff] %v2180
        %2197 = vst [vmem:[%s1389 + $0x18] sm:$0xff] %v2181
        %2198 = vst [vmem:[%s1389 + $0x20] sm:$0xff] %v2182
        %2199 = vst [vmem:[%s1389 + $0x28] sm:$0xff] %v2183
        %2200 = vst [vmem:[%s1389 + $0x30] sm:$0xff] %v2184
        %2201 = vst [vmem:[%s1389 + $0x38] sm:$0xff] %v2185
        %2202 = vst [vmem:[%s1389 + $0x40] sm:$0xff] %v2186
        %2203 = vst [vmem:[%s1389 + $0x48] sm:$0xff] %v2187
        %2204 = vst [vmem:[%s1389 + $0x50] sm:$0xff] %v2188
        %2205 = vst [vmem:[%s1389 + $0x58] sm:$0xff] %v2189
        %2206 = vst [vmem:[%s1389 + $0x60] sm:$0xff] %v2190
        %2207 = vst [vmem:[%s1389 + $0x68] sm:$0xff] %v2191
        %2208 = vst [vmem:[%s1389 + $0x70] sm:$0xff] %v2192
        %2209 = vst [vmem:[%s1389 + $0x78] sm:$0xff] %v2193
        %v2210 = vld [vmem:[%s1631] sm:$0xff]
        %v2211 = vld [vmem:[%s1631 + $0x8] sm:$0xff]
        %v2212 = vld [vmem:[%s1631 + $0x10] sm:$0xff]
        %v2213 = vld [vmem:[%s1631 + $0x18] sm:$0xff]
        %v2214 = vld [vmem:[%s1631 + $0x20] sm:$0xff]
        %v2215 = vld [vmem:[%s1631 + $0x28] sm:$0xff]
        %v2216 = vld [vmem:[%s1631 + $0x30] sm:$0xff]
        %v2217 = vld [vmem:[%s1631 + $0x38] sm:$0xff]
        %v2218 = vld [vmem:[%s1631 + $0x40] sm:$0xff]
        %v2219 = vld [vmem:[%s1631 + $0x48] sm:$0xff]
        %v2220 = vld [vmem:[%s1631 + $0x50] sm:$0xff]
        %v2221 = vld [vmem:[%s1631 + $0x58] sm:$0xff]
        %v2222 = vld [vmem:[%s1631 + $0x60] sm:$0xff]
        %v2223 = vld [vmem:[%s1631 + $0x68] sm:$0xff]
        %v2224 = vld [vmem:[%s1631 + $0x70] sm:$0xff]
        %v2225 = vld [vmem:[%s1631 + $0x78] sm:$0xff]
        %v2226 = vmul.f32 %v2027, 0.95
        %v2227 = vmul.f32 %v2029, 0.95
        %v2228 = vmul.f32 %v2032, 0.95
        %v2229 = vmul.f32 %v2034, 0.95
        %v2230 = vmul.f32 %v2037, 0.95
        %v2231 = vmul.f32 %v2039, 0.95
        %v2232 = vmul.f32 %v2042, 0.95
        %v2233 = vmul.f32 %v2044, 0.95
        %v2234 = vmul.f32 %v2047, 0.95
        %v2235 = vmul.f32 %v2049, 0.95
        %v2236 = vmul.f32 %v2052, 0.95
        %v2237 = vmul.f32 %v2054, 0.95
        %v2238 = vmul.f32 %v2057, 0.95
        %v2239 = vmul.f32 %v2059, 0.95
        %v2240 = vmul.f32 %v2062, 0.95
        %v2241 = vmul.f32 %v2064, 0.95
        %v2242 = vadd.f32 %v2210, %v2226
        %v2243 = vadd.f32 %v2211, %v2227
        %v2244 = vadd.f32 %v2212, %v2228
        %v2245 = vadd.f32 %v2213, %v2229
        %v2246 = vadd.f32 %v2214, %v2230
        %v2247 = vadd.f32 %v2215, %v2231
        %v2248 = vadd.f32 %v2216, %v2232
        %v2249 = vadd.f32 %v2217, %v2233
        %v2250 = vadd.f32 %v2218, %v2234
        %v2251 = vadd.f32 %v2219, %v2235
        %v2252 = vadd.f32 %v2220, %v2236
        %v2253 = vadd.f32 %v2221, %v2237
        %v2254 = vadd.f32 %v2222, %v2238
        %v2255 = vadd.f32 %v2223, %v2239
        %v2256 = vadd.f32 %v2224, %v2240
        %v2257 = vadd.f32 %v2225, %v2241
        %v2258 = vmin.f32 %v2242, 1.0
        %v2259 = vmin.f32 %v2243, 1.0
        %v2260 = vmin.f32 %v2244, 1.0
        %v2261 = vmin.f32 %v2245, 1.0
        %v2262 = vmin.f32 %v2246, 1.0
        %v2263 = vmin.f32 %v2247, 1.0
        %v2264 = vmin.f32 %v2248, 1.0
        %v2265 = vmin.f32 %v2249, 1.0
        %v2266 = vmin.f32 %v2250, 1.0
        %v2267 = vmin.f32 %v2251, 1.0
        %v2268 = vmin.f32 %v2252, 1.0
        %v2269 = vmin.f32 %v2253, 1.0
        %v2270 = vmin.f32 %v2254, 1.0
        %v2271 = vmin.f32 %v2255, 1.0
        %v2272 = vmin.f32 %v2256, 1.0
        %v2273 = vmin.f32 %v2257, 1.0
        %2274 = vst [vmem:[%s1631] sm:$0xff] %v2258
        %2275 = vst [vmem:[%s1631 + $0x8] sm:$0xff] %v2259
        %2276 = vst [vmem:[%s1631 + $0x10] sm:$0xff] %v2260
        %2277 = vst [vmem:[%s1631 + $0x18] sm:$0xff] %v2261
        %2278 = vst [vmem:[%s1631 + $0x20] sm:$0xff] %v2262
        %2279 = vst [vmem:[%s1631 + $0x28] sm:$0xff] %v2263
        %2280 = vst [vmem:[%s1631 + $0x30] sm:$0xff] %v2264
        %2281 = vst [vmem:[%s1631 + $0x38] sm:$0xff] %v2265
        %2282 = vst [vmem:[%s1631 + $0x40] sm:$0xff] %v2266
        %2283 = vst [vmem:[%s1631 + $0x48] sm:$0xff] %v2267
        %2284 = vst [vmem:[%s1631 + $0x50] sm:$0xff] %v2268
        %2285 = vst [vmem:[%s1631 + $0x58] sm:$0xff] %v2269
        %2286 = vst [vmem:[%s1631 + $0x60] sm:$0xff] %v2270
        %2287 = vst [vmem:[%s1631 + $0x68] sm:$0xff] %v2271
        %2288 = vst [vmem:[%s1631 + $0x70] sm:$0xff] %v2272
        %2289 = vst [vmem:[%s1631 + $0x78] sm:$0xff] %v2273
        %s2290 = sand.u32 %s262, 1
        %s2291 = scalar_lea.sflag [#allocation4], %s2290
        %s2292 = sand.u32 %s262, 1
        %s2293 = smul.addr %s2292, 384
        %s2294 = scalar_lea.vmem [#allocation19], %s2293
        // Predicated region
        $region101: #{tpu_custom_call.1} parent=59 // pred_check
          %p2295 = pneg %p272
        $region102: #{tpu_custom_call.1} parent=59 // pred_check_branch
          %2297 = sbr.rel (%p2295) target = $region104
        $region103: #{tpu_custom_call.1} parent=59 // pred_region
          %2299 = vsyncadd %s2291, 0
          %s2300 = smul.addr %s34, 48
          %s2301 = smul.addr %s2300, 8
          %s2302 = scalar_lea.hbm %s10, %s2301
          %s2303 = sshll.u32 %s2294, 4
          %s2304 = int_to_ptr.vmem [resolvable:$true] %s2303
          %s2305 = sshll.u32 %s2302, 4
          %s2306 = int_to_ptr.hbm [resolvable:$true] %s2305
          %2311 = dma.vmem_to_hbm [thread:$0]  %s2304, 6144, %s2306, %s2291, 128, 128, 8
        $region104: #{tpu_custom_call.1} parent=59 // pred_fallthru
          _
      $region60: #{tpu_custom_call.1} parent=5 // pred_fallthru
        _
      %p2312 = scmp.le.s32.totalorder 2, %s29
      // Predicated region
      $region105: #{tpu_custom_call.1} parent=5 // pred_check
        %p2313 = pneg %p2312
      $region106: #{tpu_custom_call.1} parent=5 // pred_check_branch
        %2315 = sbr.rel (%p2313) target = $region108
      $region107: #{tpu_custom_call.1} parent=5 // pred_region
        %s2316 = ssub.s32 %s29, 2
        // Predicated region
        $region109: #{tpu_custom_call.1} parent=107 // pred_check
          %p2317 = pneg %p278
        $region110: #{tpu_custom_call.1} parent=107 // pred_check_branch
          %2319 = sbr.rel (%p2317) target = $region112
        $region111: #{tpu_custom_call.1} parent=107 // pred_region
          %s2320 = sand.u32 %s263, 1
          %s2321 = scalar_lea.sflag [#allocation4], %s2320
          %s2322 = sand.u32 %s263, 1
          %s2323 = smul.addr %s2322, 384
          %s2324 = scalar_lea.vmem [#allocation19], %s2323
          %2326 = dma.done %s2321, 6144
        $region112: #{tpu_custom_call.1} parent=107 // pred_fallthru
          _
      $region108: #{tpu_custom_call.1} parent=5 // pred_fallthru
        _
    $region6: #{tpu_custom_call.1} parent=1 // loop_footer
      %s33 = sadd.s32 1, %s29
    $region7: #{tpu_custom_call.1} parent=1 // loop_footer_branch
      %28 = sbr.rel target = $region3
    $region8: #{tpu_custom_call.1} parent=1 // loop_exit
      _
    %2327 = vsyncpa [#allocation3], 1
    %s2328 = scalar_lea.sflag [#allocation3], 1
    %2329 = vsyncpa %s2328, 1
    %2330 = vsyncpa [#allocation6], 1
    %s2331 = scalar_lea.sflag [#allocation6], 1
    %2332 = vsyncpa %s2331, 1
    %2333 = vsyncpa [#allocation9], 1
    %2334 = vsyncpa [#allocation12], 1
    %2335 = vsyncpa [#allocation15], 1
    %2336 = vsyncpa [#allocation18], 1
    %2337 = vsyncpa [#allocation4], 1
    %s2338 = scalar_lea.sflag [#allocation4], 1
    %2339 = vsyncpa %s2338, 1

</llo_original>
